<compile_context>
chip_gen: v7x
topology: tpu7x:2x2x1
jax: 0.10.0
libtpu: 0.0.40
codegen_flags: <defaults>
</compile_context>

<pallas_src>
import functools
import math

import jax
import jax.numpy as jnp
from jax import lax
from jax.experimental import pallas as pl
from jax.experimental.pallas import tpu as pltpu

LN_EPS = 1e-12            # BertConfig / ViTConfig layer_norm_eps default
F32 = jnp.float32
BF16 = jnp.bfloat16


def _layernorm(x, g, b):
    mu = jnp.mean(x, axis=-1, keepdims=True)
    var = jnp.mean((x - mu) ** 2, axis=-1, keepdims=True)
    return (x - mu) * lax.rsqrt(var + LN_EPS) * g + b


def _gelu_exact(x):
    # HF BertConfig/ViTConfig default is exact (erf) GELU; keep semantics.
    # TODO(synk): on v5e consider tanh-approx GELU (EUP slot) if erf lowers to
    #   a VPU polynomial over the (S, I) intermediate.
    return 0.5 * x * (1.0 + lax.erf(x * (1.0 / math.sqrt(2.0))))


# ---------------------------------------------------------------------------
# Fused transformer-encoder kernel (grid = (batch_blocks, layer))
# ---------------------------------------------------------------------------
def encoder_kernel(x_ref, gln_ref,
                   wq_ref, wk_ref, wv_ref, wo_ref, pvec_ref,
                   wi_ref, bi_ref, wo2_ref,
                   o_ref, x_sc, ctx_sc,
                   *, num_heads, batch_block, pre_ln, embed_ln, final_ln):
    layer = pl.program_id(1)
    n_layers = pl.num_programs(1)

    BS, H = x_sc.shape                 # BS = batch_block * S (static)
    S = BS // batch_block
    hd = H // num_heads
    scale = 1.0 / math.sqrt(hd)

    # Layer 0: load the batch block into the resident VMEM residual stream
    # (BERT's embeddings LayerNorm fused here -> no extra HBM pass).
    @pl.when(layer == 0)
    def _():
        x0 = x_ref[...].reshape(BS, H).astype(F32)
        if embed_ln:
            x0 = _layernorm(x0, gln_ref[0:1], gln_ref[1:2])
        x_sc[...] = x0

    x = x_sc[...]                                  # (BS, H) f32 residual stream

    # Consolidated per-layer vector params: (9, H)
    pv = pvec_ref[0]
    bq, bk, bv, bo = pv[0:1], pv[1:2], pv[2:3], pv[3:4]
    g1, be1 = pv[4:5], pv[5:6]
    bo2 = pv[6:7]
    g2, be2 = pv[7:8], pv[8:9]

    # ---- attention block ----
    xa = _layernorm(x, g1, be1) if pre_ln else x
    xab = xa.astype(BF16)
    # fold 1/sqrt(hd) into q once (not per (S,S) score tile)
    q = (jnp.dot(xab, wq_ref[0], preferred_element_type=F32) + bq) * scale
    k = jnp.dot(xab, wk_ref[0], preferred_element_type=F32) + bk
    v = jnp.dot(xab, wv_ref[0], preferred_element_type=F32) + bv
    qb = q.astype(BF16)
    kb = k.astype(BF16)
    vb = v.astype(BF16)

    # Per-head attention; each head's context goes into a contiguous lane slice
    # of the bf16 ctx scratch so the output projection is a single full-K matmul.
    # TODO(synk): switch to lax.fori_loop(+pl.ds) for 12+ heads at prod shapes.
    for h in range(num_heads):                     # static unroll (small nh)
        sl = slice(h * hd, (h + 1) * hd)
        qh = qb[:, sl].reshape(batch_block, S, hd)
        kh = kb[:, sl].reshape(batch_block, S, hd)
        vh = vb[:, sl].reshape(batch_block, S, hd)
        s = jnp.einsum("bqd,bkd->bqk", qh, kh,
                       preferred_element_type=F32)                 # (Bb, S, S)
        s = s - jnp.max(s, axis=-1, keepdims=True)
        p = jnp.exp(s)
        # approx reciprocal (EUP): probs sum to ~1, deliberate deviation.
        p = p * pl.reciprocal(jnp.sum(p, axis=-1, keepdims=True), approx=True)
        ctx = jnp.einsum("bqk,bkd->bqd", p.astype(BF16), vh,
                         preferred_element_type=F32)               # (Bb, S, hd)
        ctx_sc[:, sl] = ctx.reshape(BS, hd).astype(BF16)

    # single full-K output projection, bias added once
    attn = jnp.dot(ctx_sc[...], wo_ref[0], preferred_element_type=F32) + bo

    if pre_ln:                                     # ViT (pre-LN)
        x1 = x + attn
        xf = _layernorm(x1, g2, be2)
    else:                                          # BERT (post-LN)
        x1 = _layernorm(x + attn, g1, be1)
        xf = x1

    # ---- feed-forward block ----
    # TODO(synk): tile over I (stream wi/wo2 chunks) for production shapes/v7x.
    hmid = jnp.dot(xf.astype(BF16), wi_ref[0], preferred_element_type=F32) + bi_ref[0]
    hmid = _gelu_exact(hmid)
    ffn = jnp.dot(hmid.astype(BF16), wo2_ref[0], preferred_element_type=F32) + bo2
    x_new = (x1 + ffn) if pre_ln else _layernorm(x1 + ffn, g2, be2)

    x_sc[...] = x_new

    # Last layer: apply ViT's final LayerNorm (if any) and emit only CLS rows.
    @pl.when(layer == n_layers - 1)
    def _():
        cls = x_new.reshape(batch_block, S, H)[:, 0:1, :]          # (Bb, 1, H)
        if final_ln:
            cls = _layernorm(cls, gln_ref[2:3], gln_ref[3:4])
        o_ref[...] = cls.astype(o_ref.dtype)


def _vmem_estimate(bb, S, H, I, num_heads):
    """Resident VMEM estimate (bytes) for one grid step with batch block bb."""
    del num_heads
    bs = bb * S
    w = 2 * (4 * H * H + 2 * H * I) * 2            # double-buffered bf16 weights
    vec = 2 * ((9 * H + I) * 4) + 4 * H * 4        # pvec + bi (dbl) + gln
    io = 2 * bs * H * 4 + 2 * bb * H * 4           # x block + CLS out (dbl)
    scratch = bs * H * 4 + bs * H * 2              # residual f32 + ctx bf16
    qkv = 3 * bs * H * (4 + 2)                     # q/k/v f32 + bf16 copies
    scores = 2 * bb * S * S * 4                    # one head's s and p (f32)
    ffn = bs * I * (4 + 2)                         # intermediate f32 + bf16
    misc = 4 * bs * H * 4                          # attn / x1 / xf / x_new
    return w + vec + io + scratch + qkv + scores + ffn + misc + (2 << 20)


def transformer_encoder(x_emb, layers, *, num_heads, pre_ln,
                        embed_ln_params=None, final_ln_params=None,
                        batch_block=None):
    """Runs a full post-LN (BERT) or pre-LN (ViT) encoder in one pallas_call.

    Returns only the CLS row per example: (B, 1, H).
    """
    B, S, H = x_emb.shape
    L = layers["wq"].shape[0]
    I = layers["wi"].shape[2]

    ones = jnp.ones((1, H), F32)
    zeros = jnp.zeros((1, H), F32)
    eg, eb = embed_ln_params if embed_ln_params is not None else (ones, zeros)
    fg, fb = final_ln_params if final_ln_params is not None else (ones, zeros)
    gln = jnp.concatenate([eg, eb, fg, fb], axis=0)                # (4, H)

    # Consolidated per-layer vector params: (L, 9, H)
    pvec = jnp.concatenate(
        [layers["bq"], layers["bk"], layers["bv"], layers["bo"],
         layers["ln1_g"], layers["ln1_b"],
         layers["bo2"], layers["ln2_g"], layers["ln2_b"]], axis=1)

    # VMEM capacity (v7x: 64 MiB/TC) minus headroom bounds the batch block.
    try:
        vmem_cap = int(pltpu.get_tpu_info().vmem_capacity_bytes)
    except Exception:
        vmem_cap = 64 << 20
    budget = vmem_cap - (8 << 20)

    if batch_block is None:
        batch_block = 1
        for bb in range(B, 0, -1):
            if B % bb == 0 and _vmem_estimate(bb, S, H, I, num_heads) <= budget:
                batch_block = bb
                break
    BS = batch_block * S

    vmem_limit = int(min(max(_vmem_estimate(batch_block, S, H, I, num_heads),
                             4 << 20), budget))

    def xmap(b, l):  # activation / CLS-output block: resident across layer axis
        return (b, 0, 0)

    def lmap(b, l):  # per-layer stacked parameter block: streamed per layer
        return (l, 0, 0)

    def smap(b, l):  # small shared 2-D params
        return (0, 0)

    in_specs = [
        pl.BlockSpec((batch_block, S, H), xmap),
        pl.BlockSpec((4, H), smap),                                 # embed/final LN
        pl.BlockSpec((1, H, H), lmap),                              # wq
        pl.BlockSpec((1, H, H), lmap),                              # wk
        pl.BlockSpec((1, H, H), lmap),                              # wv
        pl.BlockSpec((1, H, H), lmap),                              # wo
        pl.BlockSpec((1, 9, H), lmap),                              # stacked biases/LN
        pl.BlockSpec((1, H, I), lmap),                              # wi
        pl.BlockSpec((1, 1, I), lmap),                              # bi
        pl.BlockSpec((1, I, H), lmap),                              # wo2
    ]

    kernel = functools.partial(
        encoder_kernel, num_heads=num_heads, batch_block=batch_block,
        pre_ln=pre_ln,
        embed_ln=embed_ln_params is not None,
        final_ln=final_ln_params is not None)

    return pl.pallas_call(
        kernel,
        out_shape=jax.ShapeDtypeStruct((B, 1, H), F32),
        grid_spec=pltpu.PrefetchScalarGridSpec(
            num_scalar_prefetch=0,
            grid=(B // batch_block, L),
            in_specs=in_specs,
            out_specs=pl.BlockSpec((batch_block, 1, H), xmap),
            scratch_shapes=[pltpu.VMEM((BS, H), F32),
                            pltpu.VMEM((BS, H), BF16)],
        ),
        compiler_params=pltpu.CompilerParams(
            dimension_semantics=("parallel", "arbitrary"),
            vmem_limit_bytes=vmem_limit),
    )(x_emb, gln,
      layers["wq"], layers["wk"], layers["wv"], layers["wo"], pvec,
      layers["wi"], layers["bi"], layers["wo2"])


# ---------------------------------------------------------------------------
# CLIP head kernel: projections, L2-normalize, logits, symmetric cross-entropy
# ---------------------------------------------------------------------------
def clip_head_kernel(img_ref, txt_ref, pi_ref, pt_ref, temp_ref, loss_ref):
    def l2norm(z):
        n = jnp.sqrt(jnp.sum(z * z, axis=-1, keepdims=True))
        return z / jnp.maximum(n, 1e-12)                  # F.normalize semantics

    il = l2norm(jnp.dot(img_ref[...], pi_ref[...], preferred_element_type=F32))
    tl = l2norm(jnp.dot(txt_ref[...], pt_ref[...], preferred_element_type=F32))
    # il @ tl^T without materializing a transpose
    logits = lax.dot_general(il, tl, (((1,), (1,)), ((), ())),
                             preferred_element_type=F32) * jnp.exp(temp_ref[...])
    n = logits.shape[0]
    eye = (lax.broadcasted_iota(jnp.int32, (n, n), 0)
           == lax.broadcasted_iota(jnp.int32, (n, n), 1)).astype(F32)

    def ce(lg, axis):  # cross-entropy with labels = arange(n) (diagonal targets)
        m = jnp.max(lg, axis=axis, keepdims=True)
        lse = m + jnp.log(jnp.sum(jnp.exp(lg - m), axis=axis, keepdims=True))
        diag = jnp.sum(lg * eye, axis=axis, keepdims=True)
        return jnp.sum(lse - diag, keepdims=True) * (1.0 / n)

    loss_ref[...] = 0.5 * (ce(logits, 1) + ce(logits, 0))


# ---------------------------------------------------------------------------
# Plain-JAX glue: tokenized-text / pre-sized-image embeddings
# ---------------------------------------------------------------------------
def bert_embed(input_ids, p):
    S = input_ids.shape[1]
    word = p["word_emb"][input_ids]
    pos = p["pos_emb"][:S][None, :, :]
    typ = p["type_emb"][0][None, None, :]                 # token_type_ids = 0
    return (word + pos + typ).astype(F32)


def vit_embed(image, p, patch):
    """ViTImageProcessor rescale+normalize + ViT patch/CLS/position embeddings."""
    x = (image.astype(F32) / 255.0 - 0.5) / 0.5
    B, C, Hi, Wi = x.shape
    gh, gw = Hi // patch, Wi // patch
    x = x.reshape(B, C, gh, patch, gw, patch)
    x = x.transpose(0, 2, 4, 1, 3, 5).reshape(B, gh * gw, C * patch * patch)
    x = x @ p["patch_w"] + p["patch_b"]                   # conv-as-matmul patch proj
    cls = jnp.broadcast_to(p["cls"][None], (B, 1, x.shape[-1]))
    x = jnp.concatenate([cls, x], axis=1)
    return x + p["pos_emb"][None]


# ---------------------------------------------------------------------------
# Full CLIPModel.forward
# ---------------------------------------------------------------------------
def clip_forward(input_ids, image, params, *, text_heads, image_heads, patch):
    # Text tower (BertModel, post-LN; embeddings LN fused into layer 0)
    t_emb = bert_embed(input_ids, params["text"])
    t_cls = transformer_encoder(
        t_emb, params["text"]["layers"], num_heads=text_heads, pre_ln=False,
        embed_ln_params=(params["text"]["emb_ln_g"], params["text"]["emb_ln_b"]),
        final_ln_params=None)
    text_feat = t_cls[:, 0, :]                            # CLS token

    # Image tower (ViTModel, pre-LN; final LN fused into last layer)
    v_emb = vit_embed(image, params["image"], patch)
    v_cls = transformer_encoder(
        v_emb, params["image"]["layers"], num_heads=image_heads, pre_ln=True,
        embed_ln_params=None,
        final_ln_params=(params["image"]["fin_ln_g"], params["image"]["fin_ln_b"]))
    img_feat = v_cls[:, 0, :]                             # CLS token

    loss = pl.pallas_call(
        clip_head_kernel,
        out_shape=jax.ShapeDtypeStruct((1, 1), F32),
    )(img_feat, text_feat, params["img_proj"], params["txt_proj"],
      params["temperature"])
    return loss[0, 0]


# ---------------------------------------------------------------------------
# Pure-JAX f32 reference (module semantics) for validation
# ---------------------------------------------------------------------------
def _ref_layer(x, lp, li, num_heads, pre_ln):
    B, S, H = x.shape
    hd = H // num_heads
    g = lambda name: lp[name][li].astype(F32)
    xa = _layernorm(x, g("ln1_g"), g("ln1_b")) if pre_ln else x
    q = xa @ g("wq") + g("bq")
    k = xa @ g("wk") + g("bk")
    v = xa @ g("wv") + g("bv")
    split = lambda t: t.reshape(B, S, num_heads, hd).transpose(0, 2, 1, 3)
    qh, kh, vh = split(q), split(k), split(v)
    s = jnp.einsum("bhqd,bhkd->bhqk", qh, kh) / math.sqrt(hd)
    p = jax.nn.softmax(s, axis=-1)
    ctx = jnp.einsum("bhqk,bhkd->bhqd", p, vh).transpose(0, 2, 1, 3).reshape(B, S, H)
    attn = ctx @ g("wo") + g("bo")
    if pre_ln:
        x1 = x + attn
        xf = _layernorm(x1, g("ln2_g"), g("ln2_b"))
    else:
        x1 = _layernorm(x + attn, g("ln1_g"), g("ln1_b"))
        xf = x1
    h = _gelu_exact(xf @ g("wi") + g("bi"))
    ffn = h @ g("wo2") + g("bo2")
    return (x1 + ffn) if pre_ln else _layernorm(x1 + ffn, g("ln2_g"), g("ln2_b"))


def ref_encoder(x, lp, *, num_heads, pre_ln, emb_ln=None, fin_ln=None):
    if emb_ln is not None:
        x = _layernorm(x, emb_ln[0], emb_ln[1])
    for li in range(lp["wq"].shape[0]):
        x = _ref_layer(x, lp, li, num_heads, pre_ln)
    if fin_ln is not None:
        x = _layernorm(x, fin_ln[0], fin_ln[1])
    return x


def ref_clip_forward(input_ids, image, params, *, text_heads, image_heads, patch):
    t = ref_encoder(bert_embed(input_ids, params["text"]),
                    params["text"]["layers"], num_heads=text_heads, pre_ln=False,
                    emb_ln=(params["text"]["emb_ln_g"], params["text"]["emb_ln_b"]))
    v = ref_encoder(vit_embed(image, params["image"], patch),
                    params["image"]["layers"], num_heads=image_heads, pre_ln=True,
                    fin_ln=(params["image"]["fin_ln_g"], params["image"]["fin_ln_b"]))

    def l2n(z):
        norm = jnp.sqrt(jnp.sum(z * z, axis=-1, keepdims=True))
        return z / jnp.maximum(norm, 1e-12)

    il = l2n(v[:, 0, :] @ params["img_proj"])
    tl = l2n(t[:, 0, :] @ params["txt_proj"])
    logits = il @ tl.T * jnp.exp(params["temperature"][0, 0])
    n = logits.shape[0]
    labels = jnp.arange(n)
    li = -jnp.mean(jax.nn.log_softmax(logits, axis=-1)[labels, labels])
    lt = -jnp.mean(jax.nn.log_softmax(logits.T, axis=-1)[labels, labels])
    return 0.5 * (li + lt)


# ---------------------------------------------------------------------------
# Deterministic synthetic parameters (bf16 matmul weights, f32 biases/LN/embeds)
# ---------------------------------------------------------------------------
def _init_layer_stack(key, H, L):
    I = 4 * H
    std = 0.02
    ks = iter(jax.random.split(key, 12))
    wf = lambda shape: std * jax.random.normal(next(ks), shape, dtype=F32)
    wb = lambda shape: wf(shape).astype(BF16)
    return {
        "wq": wb((L, H, H)), "bq": wf((L, 1, H)),
        "wk": wb((L, H, H)), "bk": wf((L, 1, H)),
        "wv": wb((L, H, H)), "bv": wf((L, 1, H)),
        "wo": wb((L, H, H)), "bo": wf((L, 1, H)),
        "ln1_g": jnp.ones((L, 1, H), F32), "ln1_b": jnp.zeros((L, 1, H), F32),
        "wi": wb((L, H, I)), "bi": wf((L, 1, I)),
        "wo2": wb((L, I, H)), "bo2": wf((L, 1, H)),
        "ln2_g": jnp.ones((L, 1, H), F32), "ln2_b": jnp.zeros((L, 1, H), F32),
    }


def init_text_params(key, vocab, max_pos, H, L):
    k1, k2, k3, k4 = jax.random.split(key, 4)
    std = 0.02
    return {
        "word_emb": std * jax.random.normal(k1, (vocab, H), dtype=F32),
        "pos_emb": std * jax.random.normal(k2, (max_pos, H), dtype=F32),
        "type_emb": std * jax.random.normal(k3, (2, H), dtype=F32),
        "emb_ln_g": jnp.ones((1, H), F32),
        "emb_ln_b": jnp.zeros((1, H), F32),
        "layers": _init_layer_stack(k4, H, L),
    }


def init_image_params(key, image_size, patch, C, H, L):
    k1, k2, k3, k4, k5 = jax.random.split(key, 5)
    std = 0.02
    n_patches = (image_size // patch) ** 2
    return {
        "patch_w": std * jax.random.normal(k1, (C * patch * patch, H), dtype=F32),
        "patch_b": std * jax.random.normal(k2, (H,), dtype=F32),
        "cls": std * jax.random.normal(k3, (1, H), dtype=F32),
        "pos_emb": std * jax.random.normal(k4, (n_patches + 1, H), dtype=F32),
        "fin_ln_g": jnp.ones((1, H), F32),
        "fin_ln_b": jnp.zeros((1, H), F32),
        "layers": _init_layer_stack(k5, H, L),
    }


if __name__ == "__main__":
    # Small CLIP-shaped config: batch=2; text hidden=32/layers=2/heads=2/seq=8;
    # image 32x32 RGB, patch 16 -> 5 tokens, hidden=32/layers=2/heads=2; latent=32.
    # NOTE: perf tuning must be done at production shapes (S=512,H=768,I=3072);
    # these demo shapes leave every TPU unit underfilled.
    B = 2
    SEQ, VOCAB, MAX_POS = 8, 100, 16
    T_H, T_L, T_NH = 32, 2, 2
    IMG, PATCH, C = 32, 16, 3
    V_H, V_L, V_NH = 32, 2, 2
    DIM = 32

    key = jax.random.PRNGKey(0)
    kt, kv, kp1, kp2, kid, kim = jax.random.split(key, 6)
    params = {
        "text": init_text_params(kt, VOCAB, MAX_POS, T_H, T_L),
        "image": init_image_params(kv, IMG, PATCH, C, V_H, V_L),
        "img_proj": 0.02 * jax.random.normal(kp1, (V_H, DIM), dtype=F32),
        "txt_proj": 0.02 * jax.random.normal(kp2, (T_H, DIM), dtype=F32),
        "temperature": jnp.ones((1, 1), F32),     # nn.Parameter(1.0); exp() in kernel
    }
    input_ids = jax.random.randint(kid, (B, SEQ), 0, VOCAB, dtype=jnp.int32)
    image = jax.random.uniform(kim, (B, C, IMG, IMG), dtype=F32,
                               minval=0.0, maxval=255.0)

    loss = clip_forward(input_ids, image, params,
                        text_heads=T_NH, image_heads=V_NH, patch=PATCH)
    loss = jax.block_until_ready(loss)

    ref = ref_clip_forward(input_ids, image, params,
                           text_heads=T_NH, image_heads=V_NH, patch=PATCH)
    ref = jax.block_until_ready(ref)

    assert bool(jnp.isfinite(loss)), float(loss)
    # kernel uses bf16 matmul inputs + approx reciprocal; reference is pure f32
    tol = 5e-2 + 5e-2 * abs(float(ref))
    assert abs(float(loss) - float(ref)) < tol, (float(loss), float(ref))
    print("KERNEL_OK")
</pallas_src>

<mosaic_0001>
module attributes {stable_mosaic.version = 11 : i64} {
  func.func @encoder_kernel(%arg0: i32, %arg1: i32, %arg2: memref<2x8x32xf32, #tpu.memory_space<vmem>>, %arg3: memref<4x32xf32, #tpu.memory_space<vmem>>, %arg4: memref<1x32x32xbf16, #tpu.memory_space<vmem>>, %arg5: memref<1x32x32xbf16, #tpu.memory_space<vmem>>, %arg6: memref<1x32x32xbf16, #tpu.memory_space<vmem>>, %arg7: memref<1x32x32xbf16, #tpu.memory_space<vmem>>, %arg8: memref<1x9x32xf32, #tpu.memory_space<vmem>>, %arg9: memref<1x32x128xbf16, #tpu.memory_space<vmem>>, %arg10: memref<1x1x128xf32, #tpu.memory_space<vmem>>, %arg11: memref<1x128x32xbf16, #tpu.memory_space<vmem>>, %arg12: memref<2x1x32xf32, #tpu.memory_space<vmem>>, %arg13: memref<16x32xf32, #tpu.memory_space<vmem>>, %arg14: memref<16x32xbf16, #tpu.memory_space<vmem>>) attributes {dimension_semantics = [#tpu.dimension_semantics<parallel>, #tpu.dimension_semantics<arbitrary>], iteration_bounds = array<i64: 1, 2>, scalar_prefetch = 0 : i64, scratch_operands = 2 : i64, tpu.core_type = #tpu.core_type<tc>, window_params = [{transform_indices = @transform_0, window_bounds = array<i64: 2, 8, 32>}, {pipeline_mode = #tpu.pipeline_mode<synchronous>, transform_indices = @transform_1, window_bounds = array<i64: 4, 32>}, {transform_indices = @transform_2, window_bounds = array<i64: 1, 32, 32>}, {transform_indices = @transform_3, window_bounds = array<i64: 1, 32, 32>}, {transform_indices = @transform_4, window_bounds = array<i64: 1, 32, 32>}, {transform_indices = @transform_5, window_bounds = array<i64: 1, 32, 32>}, {transform_indices = @transform_6, window_bounds = array<i64: 1, 9, 32>}, {transform_indices = @transform_7, window_bounds = array<i64: 1, 32, 128>}, {transform_indices = @transform_8, window_bounds = array<i64: 1, 1, 128>}, {transform_indices = @transform_9, window_bounds = array<i64: 1, 128, 32>}, {transform_indices = @transform_10, window_bounds = array<i64: 2, 1, 32>}]} {
    %c0_i32 = arith.constant 0 : i32
    %0 = arith.cmpi eq, %arg1, %c0_i32 : i32
    %1 = arith.extui %0 : i1 to i32
    %c0_i32_0 = arith.constant 0 : i32
    %2 = arith.cmpi ne, %1, %c0_i32_0 : i32
    scf.if %2 {
      %c0_61 = arith.constant 0 : index
      %c0_62 = arith.constant 0 : index
      %c0_63 = arith.constant 0 : index
      %158 = vector.load %arg2[%c0_61, %c0_62, %c0_63] : memref<2x8x32xf32, #tpu.memory_space<vmem>>, vector<2x8x32xf32>
      %159 = vector.shape_cast %158 : vector<2x8x32xf32> to vector<16x32xf32>
      %c0_64 = arith.constant 0 : index
      %c0_65 = arith.constant 0 : index
      %160 = vector.load %arg3[%c0_64, %c0_65] : memref<4x32xf32, #tpu.memory_space<vmem>>, vector<1x32xf32>
      %c1 = arith.constant 1 : index
      %c0_66 = arith.constant 0 : index
      %161 = vector.load %arg3[%c1, %c0_66] : memref<4x32xf32, #tpu.memory_space<vmem>>, vector<1x32xf32>
      %cst_67 = arith.constant dense<0.000000e+00> : vector<16xf32>
      %162 = vector.multi_reduction <add>, %159, %cst_67 [1] : vector<16x32xf32> to vector<16xf32>
      %163 = vector.shape_cast %162 : vector<16xf32> to vector<16x1xf32>
      %cst_68 = arith.constant 3.200000e+01 : f32
      %164 = vector.broadcast %cst_68 : f32 to vector<16x1xf32>
      %165 = arith.divf %163, %164 : vector<16x1xf32>
      %166 = vector.broadcast %165 : vector<16x1xf32> to vector<16x32xf32>
      %167 = arith.subf %159, %166 : vector<16x32xf32>
      %168 = arith.mulf %167, %167 : vector<16x32xf32>
      %cst_69 = arith.constant dense<0.000000e+00> : vector<16xf32>
      %169 = vector.multi_reduction <add>, %168, %cst_69 [1] : vector<16x32xf32> to vector<16xf32>
      %170 = vector.shape_cast %169 : vector<16xf32> to vector<16x1xf32>
      %cst_70 = arith.constant 3.200000e+01 : f32
      %171 = vector.broadcast %cst_70 : f32 to vector<16x1xf32>
      %172 = arith.divf %170, %171 : vector<16x1xf32>
      %173 = vector.broadcast %165 : vector<16x1xf32> to vector<16x32xf32>
      %174 = arith.subf %159, %173 : vector<16x32xf32>
      %cst_71 = arith.constant 9.99999996E-13 : f32
      %175 = vector.broadcast %cst_71 : f32 to vector<16x1xf32>
      %176 = arith.addf %172, %175 : vector<16x1xf32>
      %177 = math.rsqrt %176 : vector<16x1xf32>
      %178 = vector.broadcast %177 : vector<16x1xf32> to vector<16x32xf32>
      %179 = arith.mulf %174, %178 : vector<16x32xf32>
      %180 = vector.broadcast %160 : vector<1x32xf32> to vector<16x32xf32>
      %181 = arith.mulf %179, %180 : vector<16x32xf32>
      %182 = vector.broadcast %161 : vector<1x32xf32> to vector<16x32xf32>
      %183 = arith.addf %181, %182 : vector<16x32xf32>
      %c0_72 = arith.constant 0 : index
      %c0_73 = arith.constant 0 : index
      %184 = vector.load %arg13[%c0_72, %c0_73] : memref<16x32xf32, #tpu.memory_space<vmem>>, vector<16x32xf32>
      tpu.vector_store %arg13[%c0_72, %c0_73], %183 {strides = array<i32>} : memref<16x32xf32, #tpu.memory_space<vmem>>, vector<16x32xf32>,
    } else {
    }
    %c0 = arith.constant 0 : index
    %c0_1 = arith.constant 0 : index
    %3 = vector.load %arg13[%c0, %c0_1] : memref<16x32xf32, #tpu.memory_space<vmem>>, vector<16x32xf32>
    %c0_2 = arith.constant 0 : index
    %c0_3 = arith.constant 0 : index
    %c0_4 = arith.constant 0 : index
    %4 = vector.load %arg8[%c0_2, %c0_3, %c0_4] : memref<1x9x32xf32, #tpu.memory_space<vmem>>, vector<1x9x32xf32>
    %5 = vector.shape_cast %4 : vector<1x9x32xf32> to vector<9x32xf32>
    %6 = vector.extract_strided_slice %5 {offsets = [0, 0], sizes = [1, 32], strides = [1, 1]} : vector<9x32xf32> to vector<1x32xf32>
    %7 = vector.extract_strided_slice %5 {offsets = [1, 0], sizes = [1, 32], strides = [1, 1]} : vector<9x32xf32> to vector<1x32xf32>
    %8 = vector.extract_strided_slice %5 {offsets = [2, 0], sizes = [1, 32], strides = [1, 1]} : vector<9x32xf32> to vector<1x32xf32>
    %9 = vector.extract_strided_slice %5 {offsets = [3, 0], sizes = [1, 32], strides = [1, 1]} : vector<9x32xf32> to vector<1x32xf32>
    %10 = vector.extract_strided_slice %5 {offsets = [4, 0], sizes = [1, 32], strides = [1, 1]} : vector<9x32xf32> to vector<1x32xf32>
    %11 = vector.extract_strided_slice %5 {offsets = [5, 0], sizes = [1, 32], strides = [1, 1]} : vector<9x32xf32> to vector<1x32xf32>
    %12 = vector.extract_strided_slice %5 {offsets = [6, 0], sizes = [1, 32], strides = [1, 1]} : vector<9x32xf32> to vector<1x32xf32>
    %13 = vector.extract_strided_slice %5 {offsets = [7, 0], sizes = [1, 32], strides = [1, 1]} : vector<9x32xf32> to vector<1x32xf32>
    %14 = vector.extract_strided_slice %5 {offsets = [8, 0], sizes = [1, 32], strides = [1, 1]} : vector<9x32xf32> to vector<1x32xf32>
    %15 = arith.truncf %3 : vector<16x32xf32> to vector<16x32xbf16>
    %c0_5 = arith.constant 0 : index
    %c0_6 = arith.constant 0 : index
    %c0_7 = arith.constant 0 : index
    %16 = vector.load %arg4[%c0_5, %c0_6, %c0_7] : memref<1x32x32xbf16, #tpu.memory_space<vmem>>, vector<1x32x32xbf16>
    %17 = vector.shape_cast %16 : vector<1x32x32xbf16> to vector<32x32xbf16>
    %cst = arith.constant dense<0.000000e+00> : vector<16x32xf32>
    %18 = tpu.matmul %15, %17, %cst {dimension_numbers = #tpu.dot_dimension_numbers<[1], [0], [0], [1], [0, 0, 1, 1], [], []>} : vector<16x32xbf16>, vector<32x32xbf16>, vector<16x32xf32> -> vector<16x32xf32>
    %19 = vector.broadcast %6 : vector<1x32xf32> to vector<16x32xf32>
    %20 = arith.addf %18, %19 : vector<16x32xf32>
    %cst_8 = arith.constant 2.500000e-01 : f32
    %21 = vector.broadcast %cst_8 : f32 to vector<16x32xf32>
    %22 = arith.mulf %20, %21 : vector<16x32xf32>
    %c0_9 = arith.constant 0 : index
    %c0_10 = arith.constant 0 : index
    %c0_11 = arith.constant 0 : index
    %23 = vector.load %arg5[%c0_9, %c0_10, %c0_11] : memref<1x32x32xbf16, #tpu.memory_space<vmem>>, vector<1x32x32xbf16>
    %24 = vector.shape_cast %23 : vector<1x32x32xbf16> to vector<32x32xbf16>
    %cst_12 = arith.constant dense<0.000000e+00> : vector<16x32xf32>
    %25 = tpu.matmul %15, %24, %cst_12 {dimension_numbers = #tpu.dot_dimension_numbers<[1], [0], [0], [1], [0, 0, 1, 1], [], []>} : vector<16x32xbf16>, vector<32x32xbf16>, vector<16x32xf32> -> vector<16x32xf32>
    %26 = vector.broadcast %7 : vector<1x32xf32> to vector<16x32xf32>
    %27 = arith.addf %25, %26 : vector<16x32xf32>
    %c0_13 = arith.constant 0 : index
    %c0_14 = arith.constant 0 : index
    %c0_15 = arith.constant 0 : index
    %28 = vector.load %arg6[%c0_13, %c0_14, %c0_15] : memref<1x32x32xbf16, #tpu.memory_space<vmem>>, vector<1x32x32xbf16>
    %29 = vector.shape_cast %28 : vector<1x32x32xbf16> to vector<32x32xbf16>
    %cst_16 = arith.constant dense<0.000000e+00> : vector<16x32xf32>
    %30 = tpu.matmul %15, %29, %cst_16 {dimension_numbers = #tpu.dot_dimension_numbers<[1], [0], [0], [1], [0, 0, 1, 1], [], []>} : vector<16x32xbf16>, vector<32x32xbf16>, vector<16x32xf32> -> vector<16x32xf32>
    %31 = vector.broadcast %8 : vector<1x32xf32> to vector<16x32xf32>
    %32 = arith.addf %30, %31 : vector<16x32xf32>
    %33 = arith.truncf %22 : vector<16x32xf32> to vector<16x32xbf16>
    %34 = arith.truncf %27 : vector<16x32xf32> to vector<16x32xbf16>
    %35 = arith.truncf %32 : vector<16x32xf32> to vector<16x32xbf16>
    %36 = vector.extract_strided_slice %33 {offsets = [0, 0], sizes = [16, 16], strides = [1, 1]} : vector<16x32xbf16> to vector<16x16xbf16>
    %37 = vector.shape_cast %36 : vector<16x16xbf16> to vector<2x8x16xbf16>
    %38 = vector.extract_strided_slice %34 {offsets = [0, 0], sizes = [16, 16], strides = [1, 1]} : vector<16x32xbf16> to vector<16x16xbf16>
    %39 = vector.shape_cast %38 : vector<16x16xbf16> to vector<2x8x16xbf16>
    %40 = vector.extract_strided_slice %35 {offsets = [0, 0], sizes = [16, 16], strides = [1, 1]} : vector<16x32xbf16> to vector<16x16xbf16>
    %41 = vector.shape_cast %40 : vector<16x16xbf16> to vector<2x8x16xbf16>
    "tpu.trace_start"() <{level = 10 : i32, message = "bqd,bkd->bqk"}> : () -> ()
    %cst_17 = arith.constant dense<0.000000e+00> : vector<2x8x8xf32>
    %42 = tpu.matmul %37, %39, %cst_17 {dimension_numbers = #tpu.dot_dimension_numbers<[2], [2], [1], [1], [0, 0, 0, 1, 1, 1], [0], [0]>} : vector<2x8x16xbf16>, vector<2x8x16xbf16>, vector<2x8x8xf32> -> vector<2x8x8xf32>
    "tpu.trace_stop"() : () -> ()
    %cst_18 = arith.constant dense<0xFF800000> : vector<2x8xf32>
    %43 = vector.multi_reduction <maximumf>, %42, %cst_18 [2] : vector<2x8x8xf32> to vector<2x8xf32>
    %44 = vector.shape_cast %43 : vector<2x8xf32> to vector<2x8x1xf32>
    %45 = vector.broadcast %44 : vector<2x8x1xf32> to vector<2x8x8xf32>
    %46 = arith.subf %42, %45 : vector<2x8x8xf32>
    %47 = math.exp %46 : vector<2x8x8xf32>
    %cst_19 = arith.constant dense<0.000000e+00> : vector<2x8xf32>
    %48 = vector.multi_reduction <add>, %47, %cst_19 [2] : vector<2x8x8xf32> to vector<2x8xf32>
    %49 = vector.shape_cast %48 : vector<2x8xf32> to vector<2x8x1xf32>
    %50 = tpu.reciprocal %49 {approx = true} : vector<2x8x1xf32> -> vector<2x8x1xf32>
    %51 = vector.broadcast %50 : vector<2x8x1xf32> to vector<2x8x8xf32>
    %52 = arith.mulf %47, %51 : vector<2x8x8xf32>
    %53 = arith.truncf %52 : vector<2x8x8xf32> to vector<2x8x8xbf16>
    "tpu.trace_start"() <{level = 10 : i32, message = "bqk,bkd->bqd"}> : () -> ()
    %cst_20 = arith.constant dense<0.000000e+00> : vector<2x8x16xf32>
    %54 = tpu.matmul %53, %41, %cst_20 {dimension_numbers = #tpu.dot_dimension_numbers<[2], [1], [1], [2], [0, 0, 0, 1, 1, 2], [0], [0]>} : vector<2x8x8xbf16>, vector<2x8x16xbf16>, vector<2x8x16xf32> -> vector<2x8x16xf32>
    "tpu.trace_stop"() : () -> ()
    %55 = vector.shape_cast %54 : vector<2x8x16xf32> to vector<16x16xf32>
    %56 = arith.truncf %55 : vector<16x16xf32> to vector<16x16xbf16>
    %c0_21 = arith.constant 0 : index
    %c0_22 = arith.constant 0 : index
    %57 = vector.load %arg14[%c0_21, %c0_22] : memref<16x32xbf16, #tpu.memory_space<vmem>>, vector<16x16xbf16>
    tpu.vector_store %arg14[%c0_21, %c0_22], %56 {strides = array<i32>} : memref<16x32xbf16, #tpu.memory_space<vmem>>, vector<16x16xbf16>,
    %58 = vector.extract_strided_slice %33 {offsets = [0, 16], sizes = [16, 16], strides = [1, 1]} : vector<16x32xbf16> to vector<16x16xbf16>
    %59 = vector.shape_cast %58 : vector<16x16xbf16> to vector<2x8x16xbf16>
    %60 = vector.extract_strided_slice %34 {offsets = [0, 16], sizes = [16, 16], strides = [1, 1]} : vector<16x32xbf16> to vector<16x16xbf16>
    %61 = vector.shape_cast %60 : vector<16x16xbf16> to vector<2x8x16xbf16>
    %62 = vector.extract_strided_slice %35 {offsets = [0, 16], sizes = [16, 16], strides = [1, 1]} : vector<16x32xbf16> to vector<16x16xbf16>
    %63 = vector.shape_cast %62 : vector<16x16xbf16> to vector<2x8x16xbf16>
    "tpu.trace_start"() <{level = 10 : i32, message = "bqd,bkd->bqk"}> : () -> ()
    %cst_23 = arith.constant dense<0.000000e+00> : vector<2x8x8xf32>
    %64 = tpu.matmul %59, %61, %cst_23 {dimension_numbers = #tpu.dot_dimension_numbers<[2], [2], [1], [1], [0, 0, 0, 1, 1, 1], [0], [0]>} : vector<2x8x16xbf16>, vector<2x8x16xbf16>, vector<2x8x8xf32> -> vector<2x8x8xf32>
    "tpu.trace_stop"() : () -> ()
    %cst_24 = arith.constant dense<0xFF800000> : vector<2x8xf32>
    %65 = vector.multi_reduction <maximumf>, %64, %cst_24 [2] : vector<2x8x8xf32> to vector<2x8xf32>
    %66 = vector.shape_cast %65 : vector<2x8xf32> to vector<2x8x1xf32>
    %67 = vector.broadcast %66 : vector<2x8x1xf32> to vector<2x8x8xf32>
    %68 = arith.subf %64, %67 : vector<2x8x8xf32>
    %69 = math.exp %68 : vector<2x8x8xf32>
    %cst_25 = arith.constant dense<0.000000e+00> : vector<2x8xf32>
    %70 = vector.multi_reduction <add>, %69, %cst_25 [2] : vector<2x8x8xf32> to vector<2x8xf32>
    %71 = vector.shape_cast %70 : vector<2x8xf32> to vector<2x8x1xf32>
    %72 = tpu.reciprocal %71 {approx = true} : vector<2x8x1xf32> -> vector<2x8x1xf32>
    %73 = vector.broadcast %72 : vector<2x8x1xf32> to vector<2x8x8xf32>
    %74 = arith.mulf %69, %73 : vector<2x8x8xf32>
    %75 = arith.truncf %74 : vector<2x8x8xf32> to vector<2x8x8xbf16>
    "tpu.trace_start"() <{level = 10 : i32, message = "bqk,bkd->bqd"}> : () -> ()
    %cst_26 = arith.constant dense<0.000000e+00> : vector<2x8x16xf32>
    %76 = tpu.matmul %75, %63, %cst_26 {dimension_numbers = #tpu.dot_dimension_numbers<[2], [1], [1], [2], [0, 0, 0, 1, 1, 2], [0], [0]>} : vector<2x8x8xbf16>, vector<2x8x16xbf16>, vector<2x8x16xf32> -> vector<2x8x16xf32>
    "tpu.trace_stop"() : () -> ()
    %77 = vector.shape_cast %76 : vector<2x8x16xf32> to vector<16x16xf32>
    %78 = arith.truncf %77 : vector<16x16xf32> to vector<16x16xbf16>
    %c0_27 = arith.constant 0 : index
    %c16 = arith.constant 16 : index
    %79 = vector.load %arg14[%c0_27, %c16] : memref<16x32xbf16, #tpu.memory_space<vmem>>, vector<16x16xbf16>
    tpu.vector_store %arg14[%c0_27, %c16], %78 {strides = array<i32>} : memref<16x32xbf16, #tpu.memory_space<vmem>>, vector<16x16xbf16>,
    %c0_28 = arith.constant 0 : index
    %c0_29 = arith.constant 0 : index
    %80 = vector.load %arg14[%c0_28, %c0_29] : memref<16x32xbf16, #tpu.memory_space<vmem>>, vector<16x32xbf16>
    %c0_30 = arith.constant 0 : index
    %c0_31 = arith.constant 0 : index
    %c0_32 = arith.constant 0 : index
    %81 = vector.load %arg7[%c0_30, %c0_31, %c0_32] : memref<1x32x32xbf16, #tpu.memory_space<vmem>>, vector<1x32x32xbf16>
    %82 = vector.shape_cast %81 : vector<1x32x32xbf16> to vector<32x32xbf16>
    %cst_33 = arith.constant dense<0.000000e+00> : vector<16x32xf32>
    %83 = tpu.matmul %80, %82, %cst_33 {dimension_numbers = #tpu.dot_dimension_numbers<[1], [0], [0], [1], [0, 0, 1, 1], [], []>} : vector<16x32xbf16>, vector<32x32xbf16>, vector<16x32xf32> -> vector<16x32xf32>
    %84 = vector.broadcast %9 : vector<1x32xf32> to vector<16x32xf32>
    %85 = arith.addf %83, %84 : vector<16x32xf32>
    %86 = arith.addf %3, %85 : vector<16x32xf32>
    %cst_34 = arith.constant dense<0.000000e+00> : vector<16xf32>
    %87 = vector.multi_reduction <add>, %86, %cst_34 [1] : vector<16x32xf32> to vector<16xf32>
    %88 = vector.shape_cast %87 : vector<16xf32> to vector<16x1xf32>
    %cst_35 = arith.constant 3.200000e+01 : f32
    %89 = vector.broadcast %cst_35 : f32 to vector<16x1xf32>
    %90 = arith.divf %88, %89 : vector<16x1xf32>
    %91 = vector.broadcast %90 : vector<16x1xf32> to vector<16x32xf32>
    %92 = arith.subf %86, %91 : vector<16x32xf32>
    %93 = arith.mulf %92, %92 : vector<16x32xf32>
    %cst_36 = arith.constant dense<0.000000e+00> : vector<16xf32>
    %94 = vector.multi_reduction <add>, %93, %cst_36 [1] : vector<16x32xf32> to vector<16xf32>
    %95 = vector.shape_cast %94 : vector<16xf32> to vector<16x1xf32>
    %cst_37 = arith.constant 3.200000e+01 : f32
    %96 = vector.broadcast %cst_37 : f32 to vector<16x1xf32>
    %97 = arith.divf %95, %96 : vector<16x1xf32>
    %98 = vector.broadcast %90 : vector<16x1xf32> to vector<16x32xf32>
    %99 = arith.subf %86, %98 : vector<16x32xf32>
    %cst_38 = arith.constant 9.99999996E-13 : f32
    %100 = vector.broadcast %cst_38 : f32 to vector<16x1xf32>
    %101 = arith.addf %97, %100 : vector<16x1xf32>
    %102 = math.rsqrt %101 : vector<16x1xf32>
    %103 = vector.broadcast %102 : vector<16x1xf32> to vector<16x32xf32>
    %104 = arith.mulf %99, %103 : vector<16x32xf32>
    %105 = vector.broadcast %10 : vector<1x32xf32> to vector<16x32xf32>
    %106 = arith.mulf %104, %105 : vector<16x32xf32>
    %107 = vector.broadcast %11 : vector<1x32xf32> to vector<16x32xf32>
    %108 = arith.addf %106, %107 : vector<16x32xf32>
    %109 = arith.truncf %108 : vector<16x32xf32> to vector<16x32xbf16>
    %c0_39 = arith.constant 0 : index
    %c0_40 = arith.constant 0 : index
    %c0_41 = arith.constant 0 : index
    %110 = vector.load %arg9[%c0_39, %c0_40, %c0_41] : memref<1x32x128xbf16, #tpu.memory_space<vmem>>, vector<1x32x128xbf16>
    %111 = vector.shape_cast %110 : vector<1x32x128xbf16> to vector<32x128xbf16>
    %cst_42 = arith.constant dense<0.000000e+00> : vector<16x128xf32>
    %112 = tpu.matmul %109, %111, %cst_42 {dimension_numbers = #tpu.dot_dimension_numbers<[1], [0], [0], [1], [0, 0, 1, 1], [], []>} : vector<16x32xbf16>, vector<32x128xbf16>, vector<16x128xf32> -> vector<16x128xf32>
    %c0_43 = arith.constant 0 : index
    %c0_44 = arith.constant 0 : index
    %c0_45 = arith.constant 0 : index
    %113 = vector.load %arg10[%c0_43, %c0_44, %c0_45] : memref<1x1x128xf32, #tpu.memory_space<vmem>>, vector<1x1x128xf32>
    %114 = vector.shape_cast %113 : vector<1x1x128xf32> to vector<1x128xf32>
    %115 = vector.broadcast %114 : vector<1x128xf32> to vector<16x128xf32>
    %116 = arith.addf %112, %115 : vector<16x128xf32>
    %cst_46 = arith.constant 5.000000e-01 : f32
    %117 = vector.broadcast %cst_46 : f32 to vector<16x128xf32>
    %118 = arith.mulf %117, %116 : vector<16x128xf32>
    %cst_47 = arith.constant 0.707106769 : f32
    %119 = vector.broadcast %cst_47 : f32 to vector<16x128xf32>
    %120 = arith.mulf %116, %119 : vector<16x128xf32>
    %121 = math.erf %120 : vector<16x128xf32>
    %cst_48 = arith.constant 1.000000e+00 : f32
    %122 = vector.broadcast %cst_48 : f32 to vector<16x128xf32>
    %123 = arith.addf %122, %121 : vector<16x128xf32>
    %124 = arith.mulf %118, %123 : vector<16x128xf32>
    %125 = arith.truncf %124 : vector<16x128xf32> to vector<16x128xbf16>
    %c0_49 = arith.constant 0 : index
    %c0_50 = arith.constant 0 : index
    %c0_51 = arith.constant 0 : index
    %126 = vector.load %arg11[%c0_49, %c0_50, %c0_51] : memref<1x128x32xbf16, #tpu.memory_space<vmem>>, vector<1x128x32xbf16>
    %127 = vector.shape_cast %126 : vector<1x128x32xbf16> to vector<128x32xbf16>
    %cst_52 = arith.constant dense<0.000000e+00> : vector<16x32xf32>
    %128 = tpu.matmul %125, %127, %cst_52 {dimension_numbers = #tpu.dot_dimension_numbers<[1], [0], [0], [1], [0, 0, 1, 1], [], []>} : vector<16x128xbf16>, vector<128x32xbf16>, vector<16x32xf32> -> vector<16x32xf32>
    %129 = vector.broadcast %12 : vector<1x32xf32> to vector<16x32xf32>
    %130 = arith.addf %128, %129 : vector<16x32xf32>
    %131 = arith.addf %108, %130 : vector<16x32xf32>
    %cst_53 = arith.constant dense<0.000000e+00> : vector<16xf32>
    %132 = vector.multi_reduction <add>, %131, %cst_53 [1] : vector<16x32xf32> to vector<16xf32>
    %133 = vector.shape_cast %132 : vector<16xf32> to vector<16x1xf32>
    %cst_54 = arith.constant 3.200000e+01 : f32
    %134 = vector.broadcast %cst_54 : f32 to vector<16x1xf32>
    %135 = arith.divf %133, %134 : vector<16x1xf32>
    %136 = vector.broadcast %135 : vector<16x1xf32> to vector<16x32xf32>
    %137 = arith.subf %131, %136 : vector<16x32xf32>
    %138 = arith.mulf %137, %137 : vector<16x32xf32>
    %cst_55 = arith.constant dense<0.000000e+00> : vector<16xf32>
    %139 = vector.multi_reduction <add>, %138, %cst_55 [1] : vector<16x32xf32> to vector<16xf32>
    %140 = vector.shape_cast %139 : vector<16xf32> to vector<16x1xf32>
    %cst_56 = arith.constant 3.200000e+01 : f32
    %141 = vector.broadcast %cst_56 : f32 to vector<16x1xf32>
    %142 = arith.divf %140, %141 : vector<16x1xf32>
    %143 = vector.broadcast %135 : vector<16x1xf32> to vector<16x32xf32>
    %144 = arith.subf %131, %143 : vector<16x32xf32>
    %cst_57 = arith.constant 9.99999996E-13 : f32
    %145 = vector.broadcast %cst_57 : f32 to vector<16x1xf32>
    %146 = arith.addf %142, %145 : vector<16x1xf32>
    %147 = math.rsqrt %146 : vector<16x1xf32>
    %148 = vector.broadcast %147 : vector<16x1xf32> to vector<16x32xf32>
    %149 = arith.mulf %144, %148 : vector<16x32xf32>
    %150 = vector.broadcast %13 : vector<1x32xf32> to vector<16x32xf32>
    %151 = arith.mulf %149, %150 : vector<16x32xf32>
    %152 = vector.broadcast %14 : vector<1x32xf32> to vector<16x32xf32>
    %153 = arith.addf %151, %152 : vector<16x32xf32>
    %c0_58 = arith.constant 0 : index
    %c0_59 = arith.constant 0 : index
    %154 = vector.load %arg13[%c0_58, %c0_59] : memref<16x32xf32, #tpu.memory_space<vmem>>, vector<16x32xf32>
    tpu.vector_store %arg13[%c0_58, %c0_59], %153 {strides = array<i32>} : memref<16x32xf32, #tpu.memory_space<vmem>>, vector<16x32xf32>,
    %c1_i32 = arith.constant 1 : i32
    %155 = arith.cmpi eq, %arg1, %c1_i32 : i32
    %156 = arith.extui %155 : i1 to i32
    %c0_i32_60 = arith.constant 0 : i32
    %157 = arith.cmpi ne, %156, %c0_i32_60 : i32
    scf.if %157 {
      %158 = vector.shape_cast %153 : vector<16x32xf32> to vector<2x8x32xf32>
      %159 = vector.extract_strided_slice %158 {offsets = [0, 0, 0], sizes = [2, 1, 32], strides = [1, 1, 1]} : vector<2x8x32xf32> to vector<2x1x32xf32>
      %c0_61 = arith.constant 0 : index
      %c0_62 = arith.constant 0 : index
      %c0_63 = arith.constant 0 : index
      %160 = vector.load %arg12[%c0_61, %c0_62, %c0_63] : memref<2x1x32xf32, #tpu.memory_space<vmem>>, vector<2x1x32xf32>
      tpu.vector_store %arg12[%c0_61, %c0_62, %c0_63], %159 {strides = array<i32>} : memref<2x1x32xf32, #tpu.memory_space<vmem>>, vector<2x1x32xf32>,
    } else {
    }
    return
  }
  func.func @transform_0(%arg0: i32, %arg1: i32) -> (i32, i32, i32) {
    %c0_i32 = arith.constant 0 : i32
    %c0_i32_0 = arith.constant 0 : i32
    %c0_i32_1 = arith.constant 0 : i32
    return %arg0, %c0_i32, %c0_i32_0 : i32, i32, i32
  }
  func.func @transform_1(%arg0: i32, %arg1: i32) -> (i32, i32) {
    %c0_i32 = arith.constant 0 : i32
    %c0_i32_0 = arith.constant 0 : i32
    %c0_i32_1 = arith.constant 0 : i32
    return %c0_i32, %c0_i32_0 : i32, i32
  }
  func.func @transform_2(%arg0: i32, %arg1: i32) -> (i32, i32, i32) {
    %c0_i32 = arith.constant 0 : i32
    %c0_i32_0 = arith.constant 0 : i32
    %c0_i32_1 = arith.constant 0 : i32
    return %arg1, %c0_i32, %c0_i32_0 : i32, i32, i32
  }
  func.func @transform_3(%arg0: i32, %arg1: i32) -> (i32, i32, i32) {
    %c0_i32 = arith.constant 0 : i32
    %c0_i32_0 = arith.constant 0 : i32
    %c0_i32_1 = arith.constant 0 : i32
    return %arg1, %c0_i32, %c0_i32_0 : i32, i32, i32
  }
  func.func @transform_4(%arg0: i32, %arg1: i32) -> (i32, i32, i32) {
    %c0_i32 = arith.constant 0 : i32
    %c0_i32_0 = arith.constant 0 : i32
    %c0_i32_1 = arith.constant 0 : i32
    return %arg1, %c0_i32, %c0_i32_0 : i32, i32, i32
  }
  func.func @transform_5(%arg0: i32, %arg1: i32) -> (i32, i32, i32) {
    %c0_i32 = arith.constant 0 : i32
    %c0_i32_0 = arith.constant 0 : i32
    %c0_i32_1 = arith.constant 0 : i32
    return %arg1, %c0_i32, %c0_i32_0 : i32, i32, i32
  }
  func.func @transform_6(%arg0: i32, %arg1: i32) -> (i32, i32, i32) {
    %c0_i32 = arith.constant 0 : i32
    %c0_i32_0 = arith.constant 0 : i32
    %c0_i32_1 = arith.constant 0 : i32
    return %arg1, %c0_i32, %c0_i32_0 : i32, i32, i32
  }
  func.func @transform_7(%arg0: i32, %arg1: i32) -> (i32, i32, i32) {
    %c0_i32 = arith.constant 0 : i32
    %c0_i32_0 = arith.constant 0 : i32
    %c0_i32_1 = arith.constant 0 : i32
    return %arg1, %c0_i32, %c0_i32_0 : i32, i32, i32
  }
  func.func @transform_8(%arg0: i32, %arg1: i32) -> (i32, i32, i32) {
    %c0_i32 = arith.constant 0 : i32
    %c0_i32_0 = arith.constant 0 : i32
    %c0_i32_1 = arith.constant 0 : i32
    return %arg1, %c0_i32, %c0_i32_0 : i32, i32, i32
  }
  func.func @transform_9(%arg0: i32, %arg1: i32) -> (i32, i32, i32) {
    %c0_i32 = arith.constant 0 : i32
    %c0_i32_0 = arith.constant 0 : i32
    %c0_i32_1 = arith.constant 0 : i32
    return %arg1, %c0_i32, %c0_i32_0 : i32, i32, i32
  }
  func.func @transform_10(%arg0: i32, %arg1: i32) -> (i32, i32, i32) {
    %c0_i32 = arith.constant 0 : i32
    %c0_i32_0 = arith.constant 0 : i32
    %c0_i32_1 = arith.constant 0 : i32
    return %arg0, %c0_i32, %c0_i32_0 : i32, i32, i32
  }
}

</mosaic_0001>

<llo_original>
// kernel: tpu_custom_call.1
$region0: #{tpu_custom_call.1}
  #allocation0 [shape = 'u32[]', space=smem, size = 0x4, offset = 0x4, fixed_abs, tag = 'smem constant byte address 0x4 - core index']
  #allocation1 [shape = 'u32[144,128]{1,0:T(1,128)}', space=vmem, size = 0x12000, scoped, tag = 'internal scratch']
  #allocation2 [shape = 'f32[16,32]{1,0:T(8,128)}', space=vmem, size = 0x2000, scoped, tag = 'scratch operand']
  #allocation3 [shape = 'bf16[16,32]{1,0:T(16,128)(2,1)}', space=vmem, size = 0x1000, scoped, tag = 'scratch operand']
  %s0 = inlined_call_operand.vmem [shape: f32[2,8,32], index: 0, kind: input, shape index: {}]
  %s1 = inlined_call_operand.vmem [shape: f32[4,32], index: 1, kind: input, shape index: {}]
  %s2 = inlined_call_operand.vmem [shape: bf16[2,32,32], index: 2, kind: input, shape index: {}]
  %s3 = inlined_call_operand.vmem [shape: bf16[2,32,32], index: 3, kind: input, shape index: {}]
  %s4 = inlined_call_operand.vmem [shape: bf16[2,32,32], index: 4, kind: input, shape index: {}]
  %s5 = inlined_call_operand.vmem [shape: bf16[2,32,32], index: 5, kind: input, shape index: {}]
  %s6 = inlined_call_operand.vmem [shape: f32[2,9,32], index: 6, kind: input, shape index: {}]
  %s7 = inlined_call_operand.vmem [shape: bf16[2,32,128], index: 7, kind: input, shape index: {}]
  %s8 = inlined_call_operand.vmem [shape: f32[2,1,128], index: 8, kind: input, shape index: {}]
  %s9 = inlined_call_operand.vmem [shape: bf16[2,128,32], index: 9, kind: input, shape index: {}]
  %s10 = inlined_call_operand.hbm [shape: f32[2,1,32], index: 10, kind: output, shape index: {}]
  %s11 = sld [smem:[#allocation0]]
  $region81: #{tpu_custom_call.1} parent=0
    _
  %s13 = ssub.s32 1, %s11
  %s14 = scalar_select 0, %s13, %s11
  $region1: #{tpu_custom_call.1} parent=0
    #allocation4 [shape = 'u8[1024]{0}', space=vmem, size = 0x400, scoped, tag = 'output window, operand 0, single buffered']
    #allocation5 [shape = 's32[2]{0}', space=sflag, size = 0x8, scoped, tag = 'scoped memory for tpu_custom_call.1']
    %15 = vsyncpa [#allocation5], 0
    loop: start=0, step=1, limit=4
    $region2: #{tpu_custom_call.1} parent=1 // loop_pre_header
      _
    $region3: #{tpu_custom_call.1} parent=1 // loop_header
      %s17 = sphi 0, %s21
      %p18 = scmp.ge.s32.totalorder %s17, 4
      %s24 = sphi 0, %s36
      %s25 = sphi 0, %s32
      %s26 = sphi 0, %s24
      %s27 = sphi 0, %s25
      %s28 = sphi 0, %s26
      %s29 = sphi 0, %s27
      %s39 = sphi 0, %s41
      %s42 = sphi 0, %s39
      %s43 = sphi 0, %s42
      %s59 = sphi 0, %s43
      %s63 = sphi 0, %s63
      %s65 = sphi 0, %s63
      %s66 = sphi 0, %s65
      %s80 = sphi 0, %s66
      %s86 = sphi 0, %s88
      %s89 = sphi 0, %s86
      %s90 = sphi 0, %s89
      %s106 = sphi 0, %s90
      %s112 = sphi 0, %s114
      %s115 = sphi 0, %s112
      %s116 = sphi 0, %s115
      %s132 = sphi 0, %s116
      %s138 = sphi 0, %s140
      %s141 = sphi 0, %s138
      %s142 = sphi 0, %s141
      %s158 = sphi 0, %s142
      %s164 = sphi 0, %s166
      %s167 = sphi 0, %s164
      %s168 = sphi 0, %s167
      %s184 = sphi 0, %s168
      %s190 = sphi 0, %s192
      %s193 = sphi 0, %s190
      %s194 = sphi 0, %s193
      %s210 = sphi 0, %s194
      %s216 = sphi 0, %s218
      %s219 = sphi 0, %s216
      %s220 = sphi 0, %s219
      %s236 = sphi 0, %s220
      %s242 = sphi 0, %s244
      %s245 = sphi 0, %s242
      %s246 = sphi 0, %s245
      %s262 = sphi 0, %s246
      %s268 = sphi 0, %s270
      %s271 = sphi 0, %s268
      %s272 = sphi 0, %s271
      %s288 = sphi 0, %s272
      %s294 = sphi 0, %s296
      %s297 = sphi 0, %s294
      %s298 = sphi 0, %s297
      %s314 = sphi 0, %s298
    $region4: #{tpu_custom_call.1} parent=1 // loop_header_branch
      %20 = sbr.rel (%p18) target = $region8
    $region5: #{tpu_custom_call.1} parent=1 // loop_body
      %s22 = ssub.s32 %s17, 1
      %s23 = ssub.s32 %s17, 2
      %s30 = sadd.s32 1, %s25
      %p31 = scmp.ge.s32.totalorder %s30, 2
      %s32 = scalar_select %p31, 0, %s30
      %s33 = sadd.s32 1, %s24
      %s34 = scalar_select %p31, %s33, %s24
      %p35 = scmp.ge.s32.totalorder %s34, 1
      %s36 = scalar_select %p35, 0, %s34
      %s37 = ssub.s32 %s24, %s36
      %p38 = scmp.eq.s32.totalorder %s37, 0
      %s40 = sadd.s32 %s39, 1
      %s41 = scalar_select %p38, %s39, %s40
      %p44 = pneg %p38
      %p45 = scmp.eq.s32.totalorder %s17, 1
      %p46 = por %p44, %p45
      %p47 = scmp.ne.s32.totalorder %s39, %s42
      %p48 = scmp.eq.s32.totalorder %s17, 0
      %p49 = por %p47, %p48
      %p50 = scmp.ne.s32.totalorder %s39, %s42
      %p51 = scmp.eq.s32.totalorder %s22, 1
      %p52 = por %p50, %p51
      %p53 = scmp.ne.s32.totalorder %s42, %s43
      %p54 = scmp.eq.s32.totalorder %s22, 0
      %p55 = por %p53, %p54
      %p56 = scmp.ne.s32.totalorder %s42, %s43
      %p57 = scmp.eq.s32.totalorder %s23, 1
      %p58 = por %p56, %p57
      %p60 = scmp.ne.s32.totalorder %s43, %s59
      %p61 = scmp.eq.s32.totalorder %s23, 0
      %p62 = por %p60, %p61
      %s64 = sadd.s32 %s63, 1
      %p67 = scmp.eq.s32.totalorder %s17, 1
      %p68 = scmp.ne.s32.totalorder %s63, %s65
      %p69 = scmp.eq.s32.totalorder %s17, 0
      %p70 = por %p68, %p69
      %p71 = scmp.ne.s32.totalorder %s63, %s65
      %p72 = scmp.eq.s32.totalorder %s22, 1
      %p73 = por %p71, %p72
      %p74 = scmp.ne.s32.totalorder %s65, %s66
      %p75 = scmp.eq.s32.totalorder %s22, 0
      %p76 = por %p74, %p75
      %p77 = scmp.ne.s32.totalorder %s65, %s66
      %p78 = scmp.eq.s32.totalorder %s23, 1
      %p79 = por %p77, %p78
      %p81 = scmp.ne.s32.totalorder %s66, %s80
      %p82 = scmp.eq.s32.totalorder %s23, 0
      %p83 = por %p81, %p82
      %s84 = ssub.s32 %s25, %s32
      %p85 = scmp.eq.s32.totalorder %s84, 0
      %s87 = sadd.s32 %s86, 1
      %s88 = scalar_select %p85, %s86, %s87
      %p91 = pneg %p85
      %p92 = scmp.eq.s32.totalorder %s17, 1
      %p93 = por %p91, %p92
      %p94 = scmp.ne.s32.totalorder %s86, %s89
      %p95 = scmp.eq.s32.totalorder %s17, 0
      %p96 = por %p94, %p95
      %p97 = scmp.ne.s32.totalorder %s86, %s89
      %p98 = scmp.eq.s32.totalorder %s22, 1
      %p99 = por %p97, %p98
      %p100 = scmp.ne.s32.totalorder %s89, %s90
      %p101 = scmp.eq.s32.totalorder %s22, 0
      %p102 = por %p100, %p101
      %p103 = scmp.ne.s32.totalorder %s89, %s90
      %p104 = scmp.eq.s32.totalorder %s23, 1
      %p105 = por %p103, %p104
      %p107 = scmp.ne.s32.totalorder %s90, %s106
      %p108 = scmp.eq.s32.totalorder %s23, 0
      %p109 = por %p107, %p108
      %s110 = ssub.s32 %s25, %s32
      %p111 = scmp.eq.s32.totalorder %s110, 0
      %s113 = sadd.s32 %s112, 1
      %s114 = scalar_select %p111, %s112, %s113
      %p117 = pneg %p111
      %p118 = scmp.eq.s32.totalorder %s17, 1
      %p119 = por %p117, %p118
      %p120 = scmp.ne.s32.totalorder %s112, %s115
      %p121 = scmp.eq.s32.totalorder %s17, 0
      %p122 = por %p120, %p121
      %p123 = scmp.ne.s32.totalorder %s112, %s115
      %p124 = scmp.eq.s32.totalorder %s22, 1
      %p125 = por %p123, %p124
      %p126 = scmp.ne.s32.totalorder %s115, %s116
      %p127 = scmp.eq.s32.totalorder %s22, 0
      %p128 = por %p126, %p127
      %p129 = scmp.ne.s32.totalorder %s115, %s116
      %p130 = scmp.eq.s32.totalorder %s23, 1
      %p131 = por %p129, %p130
      %p133 = scmp.ne.s32.totalorder %s116, %s132
      %p134 = scmp.eq.s32.totalorder %s23, 0
      %p135 = por %p133, %p134
      %s136 = ssub.s32 %s25, %s32
      %p137 = scmp.eq.s32.totalorder %s136, 0
      %s139 = sadd.s32 %s138, 1
      %s140 = scalar_select %p137, %s138, %s139
      %p143 = pneg %p137
      %p144 = scmp.eq.s32.totalorder %s17, 1
      %p145 = por %p143, %p144
      %p146 = scmp.ne.s32.totalorder %s138, %s141
      %p147 = scmp.eq.s32.totalorder %s17, 0
      %p148 = por %p146, %p147
      %p149 = scmp.ne.s32.totalorder %s138, %s141
      %p150 = scmp.eq.s32.totalorder %s22, 1
      %p151 = por %p149, %p150
      %p152 = scmp.ne.s32.totalorder %s141, %s142
      %p153 = scmp.eq.s32.totalorder %s22, 0
      %p154 = por %p152, %p153
      %p155 = scmp.ne.s32.totalorder %s141, %s142
      %p156 = scmp.eq.s32.totalorder %s23, 1
      %p157 = por %p155, %p156
      %p159 = scmp.ne.s32.totalorder %s142, %s158
      %p160 = scmp.eq.s32.totalorder %s23, 0
      %p161 = por %p159, %p160
      %s162 = ssub.s32 %s25, %s32
      %p163 = scmp.eq.s32.totalorder %s162, 0
      %s165 = sadd.s32 %s164, 1
      %s166 = scalar_select %p163, %s164, %s165
      %p169 = pneg %p163
      %p170 = scmp.eq.s32.totalorder %s17, 1
      %p171 = por %p169, %p170
      %p172 = scmp.ne.s32.totalorder %s164, %s167
      %p173 = scmp.eq.s32.totalorder %s17, 0
      %p174 = por %p172, %p173
      %p175 = scmp.ne.s32.totalorder %s164, %s167
      %p176 = scmp.eq.s32.totalorder %s22, 1
      %p177 = por %p175, %p176
      %p178 = scmp.ne.s32.totalorder %s167, %s168
      %p179 = scmp.eq.s32.totalorder %s22, 0
      %p180 = por %p178, %p179
      %p181 = scmp.ne.s32.totalorder %s167, %s168
      %p182 = scmp.eq.s32.totalorder %s23, 1
      %p183 = por %p181, %p182
      %p185 = scmp.ne.s32.totalorder %s168, %s184
      %p186 = scmp.eq.s32.totalorder %s23, 0
      %p187 = por %p185, %p186
      %s188 = ssub.s32 %s25, %s32
      %p189 = scmp.eq.s32.totalorder %s188, 0
      %s191 = sadd.s32 %s190, 1
      %s192 = scalar_select %p189, %s190, %s191
      %p195 = pneg %p189
      %p196 = scmp.eq.s32.totalorder %s17, 1
      %p197 = por %p195, %p196
      %p198 = scmp.ne.s32.totalorder %s190, %s193
      %p199 = scmp.eq.s32.totalorder %s17, 0
      %p200 = por %p198, %p199
      %p201 = scmp.ne.s32.totalorder %s190, %s193
      %p202 = scmp.eq.s32.totalorder %s22, 1
      %p203 = por %p201, %p202
      %p204 = scmp.ne.s32.totalorder %s193, %s194
      %p205 = scmp.eq.s32.totalorder %s22, 0
      %p206 = por %p204, %p205
      %p207 = scmp.ne.s32.totalorder %s193, %s194
      %p208 = scmp.eq.s32.totalorder %s23, 1
      %p209 = por %p207, %p208
      %p211 = scmp.ne.s32.totalorder %s194, %s210
      %p212 = scmp.eq.s32.totalorder %s23, 0
      %p213 = por %p211, %p212
      %s214 = ssub.s32 %s25, %s32
      %p215 = scmp.eq.s32.totalorder %s214, 0
      %s217 = sadd.s32 %s216, 1
      %s218 = scalar_select %p215, %s216, %s217
      %p221 = pneg %p215
      %p222 = scmp.eq.s32.totalorder %s17, 1
      %p223 = por %p221, %p222
      %p224 = scmp.ne.s32.totalorder %s216, %s219
      %p225 = scmp.eq.s32.totalorder %s17, 0
      %p226 = por %p224, %p225
      %p227 = scmp.ne.s32.totalorder %s216, %s219
      %p228 = scmp.eq.s32.totalorder %s22, 1
      %p229 = por %p227, %p228
      %p230 = scmp.ne.s32.totalorder %s219, %s220
      %p231 = scmp.eq.s32.totalorder %s22, 0
      %p232 = por %p230, %p231
      %p233 = scmp.ne.s32.totalorder %s219, %s220
      %p234 = scmp.eq.s32.totalorder %s23, 1
      %p235 = por %p233, %p234
      %p237 = scmp.ne.s32.totalorder %s220, %s236
      %p238 = scmp.eq.s32.totalorder %s23, 0
      %p239 = por %p237, %p238
      %s240 = ssub.s32 %s25, %s32
      %p241 = scmp.eq.s32.totalorder %s240, 0
      %s243 = sadd.s32 %s242, 1
      %s244 = scalar_select %p241, %s242, %s243
      %p247 = pneg %p241
      %p248 = scmp.eq.s32.totalorder %s17, 1
      %p249 = por %p247, %p248
      %p250 = scmp.ne.s32.totalorder %s242, %s245
      %p251 = scmp.eq.s32.totalorder %s17, 0
      %p252 = por %p250, %p251
      %p253 = scmp.ne.s32.totalorder %s242, %s245
      %p254 = scmp.eq.s32.totalorder %s22, 1
      %p255 = por %p253, %p254
      %p256 = scmp.ne.s32.totalorder %s245, %s246
      %p257 = scmp.eq.s32.totalorder %s22, 0
      %p258 = por %p256, %p257
      %p259 = scmp.ne.s32.totalorder %s245, %s246
      %p260 = scmp.eq.s32.totalorder %s23, 1
      %p261 = por %p259, %p260
      %p263 = scmp.ne.s32.totalorder %s246, %s262
      %p264 = scmp.eq.s32.totalorder %s23, 0
      %p265 = por %p263, %p264
      %s266 = ssub.s32 %s25, %s32
      %p267 = scmp.eq.s32.totalorder %s266, 0
      %s269 = sadd.s32 %s268, 1
      %s270 = scalar_select %p267, %s268, %s269
      %p273 = pneg %p267
      %p274 = scmp.eq.s32.totalorder %s17, 1
      %p275 = por %p273, %p274
      %p276 = scmp.ne.s32.totalorder %s268, %s271
      %p277 = scmp.eq.s32.totalorder %s17, 0
      %p278 = por %p276, %p277
      %p279 = scmp.ne.s32.totalorder %s268, %s271
      %p280 = scmp.eq.s32.totalorder %s22, 1
      %p281 = por %p279, %p280
      %p282 = scmp.ne.s32.totalorder %s271, %s272
      %p283 = scmp.eq.s32.totalorder %s22, 0
      %p284 = por %p282, %p283
      %p285 = scmp.ne.s32.totalorder %s271, %s272
      %p286 = scmp.eq.s32.totalorder %s23, 1
      %p287 = por %p285, %p286
      %p289 = scmp.ne.s32.totalorder %s272, %s288
      %p290 = scmp.eq.s32.totalorder %s23, 0
      %p291 = por %p289, %p290
      %s292 = ssub.s32 %s24, %s36
      %p293 = scmp.eq.s32.totalorder %s292, 0
      %s295 = sadd.s32 %s294, 1
      %s296 = scalar_select %p293, %s294, %s295
      %p299 = pneg %p293
      %p300 = scmp.eq.s32.totalorder %s17, 1
      %p301 = por %p299, %p300
      %p302 = scmp.ne.s32.totalorder %s294, %s297
      %p303 = scmp.eq.s32.totalorder %s17, 0
      %p304 = por %p302, %p303
      %p305 = scmp.ne.s32.totalorder %s294, %s297
      %p306 = scmp.eq.s32.totalorder %s22, 1
      %p307 = por %p305, %p306
      %p308 = scmp.ne.s32.totalorder %s297, %s298
      %p309 = scmp.eq.s32.totalorder %s22, 0
      %p310 = por %p308, %p309
      %p311 = scmp.ne.s32.totalorder %s297, %s298
      %p312 = scmp.eq.s32.totalorder %s23, 1
      %p313 = por %p311, %p312
      %p315 = scmp.ne.s32.totalorder %s298, %s314
      %p316 = scmp.eq.s32.totalorder %s23, 0
      %p317 = por %p315, %p316
      %p318 = scmp.le.s32.totalorder 1, %s17
      %p319 = scmp.lt.s32.totalorder %s17, 3
      %p320 = pnand %p318, %p319
      %p321 = pneg %p320
      // Predicated region
      $region9: #{tpu_custom_call.1} parent=5 // pred_check
        _
      $region10: #{tpu_custom_call.1} parent=5 // pred_check_branch
        %323 = sbr.rel (%p320) target = $region12
      $region11: #{tpu_custom_call.1} parent=5 // pred_region
        %s324 = ssub.s32 %s17, 1
        // Predicated region
        $region13: #{tpu_custom_call.1} parent=11 // pred_check
          %p325 = pneg %p55
        $region14: #{tpu_custom_call.1} parent=11 // pred_check_branch
          %327 = sbr.rel (%p325) target = $region16
        $region15: #{tpu_custom_call.1} parent=11 // pred_region
          %s328 = smul.u32 2, %s26
          %p329 = scmp.lt.s32.totalorder %s328, 1
          %s330 = scalar_select %p329, %s328, 1
          %s331 = smul.addr %s330, 8
          %s332 = scalar_lea.vmem %s0, %s331
          %s333 = smul.u32 2, %s26
        $region16: #{tpu_custom_call.1} parent=11 // pred_fallthru
          _
        // Predicated region
        $region17: #{tpu_custom_call.1} parent=11 // pred_check
          %p334 = pneg %p76
        $region18: #{tpu_custom_call.1} parent=11 // pred_check_branch
          %336 = sbr.rel (%p334) target = $region20
        $region19: #{tpu_custom_call.1} parent=11 // pred_region
          _
        $region20: #{tpu_custom_call.1} parent=11 // pred_fallthru
          _
      $region12: #{tpu_custom_call.1} parent=5 // pred_fallthru
        _
      %p337 = scmp.lt.s32.totalorder %s17, 2
      // Predicated region
      $region21: #{tpu_custom_call.1} parent=5 // pred_check
        %p338 = pneg %p337
      $region22: #{tpu_custom_call.1} parent=5 // pred_check_branch
        %340 = sbr.rel (%p338) target = $region24
      $region23: #{tpu_custom_call.1} parent=5 // pred_region
        // Predicated region
        $region25: #{tpu_custom_call.1} parent=23 // pred_check
          %p341 = pneg %p96
        $region26: #{tpu_custom_call.1} parent=23 // pred_check_branch
          %343 = sbr.rel (%p341) target = $region28
        $region27: #{tpu_custom_call.1} parent=23 // pred_region
          %p344 = scmp.lt.s32.totalorder %s25, 1
          %s345 = scalar_select %p344, %s25, 1
          %s346 = smul.addr %s345, 4
          %s347 = smul.addr %s346, 4
          %s348 = scalar_lea.vmem %s2, %s347
        $region28: #{tpu_custom_call.1} parent=23 // pred_fallthru
          _
        // Predicated region
        $region29: #{tpu_custom_call.1} parent=23 // pred_check
          %p349 = pneg %p122
        $region30: #{tpu_custom_call.1} parent=23 // pred_check_branch
          %351 = sbr.rel (%p349) target = $region32
        $region31: #{tpu_custom_call.1} parent=23 // pred_region
          %p352 = scmp.lt.s32.totalorder %s25, 1
          %s353 = scalar_select %p352, %s25, 1
          %s354 = smul.addr %s353, 4
          %s355 = smul.addr %s354, 4
          %s356 = scalar_lea.vmem %s3, %s355
        $region32: #{tpu_custom_call.1} parent=23 // pred_fallthru
          _
        // Predicated region
        $region33: #{tpu_custom_call.1} parent=23 // pred_check
          %p357 = pneg %p148
        $region34: #{tpu_custom_call.1} parent=23 // pred_check_branch
          %359 = sbr.rel (%p357) target = $region36
        $region35: #{tpu_custom_call.1} parent=23 // pred_region
          %p360 = scmp.lt.s32.totalorder %s25, 1
          %s361 = scalar_select %p360, %s25, 1
          %s362 = smul.addr %s361, 4
          %s363 = smul.addr %s362, 4
          %s364 = scalar_lea.vmem %s4, %s363
        $region36: #{tpu_custom_call.1} parent=23 // pred_fallthru
          _
        // Predicated region
        $region37: #{tpu_custom_call.1} parent=23 // pred_check
          %p365 = pneg %p174
        $region38: #{tpu_custom_call.1} parent=23 // pred_check_branch
          %367 = sbr.rel (%p365) target = $region40
        $region39: #{tpu_custom_call.1} parent=23 // pred_region
          %p368 = scmp.lt.s32.totalorder %s25, 1
          %s369 = scalar_select %p368, %s25, 1
          %s370 = smul.addr %s369, 4
          %s371 = smul.addr %s370, 4
          %s372 = scalar_lea.vmem %s5, %s371
        $region40: #{tpu_custom_call.1} parent=23 // pred_fallthru
          _
        // Predicated region
        $region41: #{tpu_custom_call.1} parent=23 // pred_check
          %p373 = pneg %p200
        $region42: #{tpu_custom_call.1} parent=23 // pred_check_branch
          %375 = sbr.rel (%p373) target = $region44
        $region43: #{tpu_custom_call.1} parent=23 // pred_region
          %p376 = scmp.lt.s32.totalorder %s25, 1
          %s377 = scalar_select %p376, %s25, 1
          %s378 = smul.addr %s377, 2
          %s379 = smul.addr %s378, 8
          %s380 = scalar_lea.vmem %s6, %s379
        $region44: #{tpu_custom_call.1} parent=23 // pred_fallthru
          _
        // Predicated region
        $region45: #{tpu_custom_call.1} parent=23 // pred_check
          %p381 = pneg %p226
        $region46: #{tpu_custom_call.1} parent=23 // pred_check_branch
          %383 = sbr.rel (%p381) target = $region48
        $region47: #{tpu_custom_call.1} parent=23 // pred_region
          %p384 = scmp.lt.s32.totalorder %s25, 1
          %s385 = scalar_select %p384, %s25, 1
          %s386 = smul.addr %s385, 4
          %s387 = smul.addr %s386, 4
          %s388 = scalar_lea.vmem %s7, %s387
        $region48: #{tpu_custom_call.1} parent=23 // pred_fallthru
          _
        // Predicated region
        $region49: #{tpu_custom_call.1} parent=23 // pred_check
          %p389 = pneg %p252
        $region50: #{tpu_custom_call.1} parent=23 // pred_check_branch
          %391 = sbr.rel (%p389) target = $region52
        $region51: #{tpu_custom_call.1} parent=23 // pred_region
          %p392 = scmp.lt.s32.totalorder %s25, 1
          %s393 = scalar_select %p392, %s25, 1
          %s394 = scalar_lea.vmem %s8, %s393
        $region52: #{tpu_custom_call.1} parent=23 // pred_fallthru
          _
        // Predicated region
        $region53: #{tpu_custom_call.1} parent=23 // pred_check
          %p395 = pneg %p278
        $region54: #{tpu_custom_call.1} parent=23 // pred_check_branch
          %397 = sbr.rel (%p395) target = $region56
        $region55: #{tpu_custom_call.1} parent=23 // pred_region
          %p398 = scmp.lt.s32.totalorder %s25, 1
          %s399 = scalar_select %p398, %s25, 1
          %s400 = smul.addr %s399, 16
          %s401 = smul.addr %s400, 4
          %s402 = scalar_lea.vmem %s9, %s401
        $region56: #{tpu_custom_call.1} parent=23 // pred_fallthru
          _
      $region24: #{tpu_custom_call.1} parent=5 // pred_fallthru
        _
      %p403 = scmp.le.s32.totalorder 1, %s17
      %p404 = scmp.lt.s32.totalorder %s17, 3
      %p405 = pnand %p403, %p404
      %p406 = pneg %p405
      // Predicated region
      $region57: #{tpu_custom_call.1} parent=5 // pred_check
        _
      $region58: #{tpu_custom_call.1} parent=5 // pred_check_branch
        %408 = sbr.rel (%p405) target = $region60
      $region59: #{tpu_custom_call.1} parent=5 // pred_region
        %s409 = ssub.s32 %s17, 1
        %s410 = smul.u32 2, %s26
        %p411 = scmp.lt.s32.totalorder %s410, 1
        %s412 = scalar_select %p411, %s410, 1
        %s413 = smul.addr %s412, 8
        %s414 = scalar_lea.vmem %s0, %s413
        %p415 = pneg %p55
        %p416 = pneg %p52
        %p417 = pneg %p76
        %p418 = pneg %p73
        %p419 = scmp.lt.s32.totalorder %s27, 1
        %s420 = scalar_select %p419, %s27, 1
        %s421 = smul.addr %s420, 4
        %s422 = smul.addr %s421, 4
        %s423 = scalar_lea.vmem %s2, %s422
        %p424 = pneg %p102
        %p425 = pneg %p99
        %p426 = scmp.lt.s32.totalorder %s27, 1
        %s427 = scalar_select %p426, %s27, 1
        %s428 = smul.addr %s427, 4
        %s429 = smul.addr %s428, 4
        %s430 = scalar_lea.vmem %s3, %s429
        %p431 = pneg %p128
        %p432 = pneg %p125
        %p433 = scmp.lt.s32.totalorder %s27, 1
        %s434 = scalar_select %p433, %s27, 1
        %s435 = smul.addr %s434, 4
        %s436 = smul.addr %s435, 4
        %s437 = scalar_lea.vmem %s4, %s436
        %p438 = pneg %p154
        %p439 = pneg %p151
        %p440 = scmp.lt.s32.totalorder %s27, 1
        %s441 = scalar_select %p440, %s27, 1
        %s442 = smul.addr %s441, 4
        %s443 = smul.addr %s442, 4
        %s444 = scalar_lea.vmem %s5, %s443
        %p445 = pneg %p180
        %p446 = pneg %p177
        %p447 = scmp.lt.s32.totalorder %s27, 1
        %s448 = scalar_select %p447, %s27, 1
        %s449 = smul.addr %s448, 2
        %s450 = smul.addr %s449, 8
        %s451 = scalar_lea.vmem %s6, %s450
        %p452 = pneg %p206
        %p453 = pneg %p203
        %p454 = scmp.lt.s32.totalorder %s27, 1
        %s455 = scalar_select %p454, %s27, 1
        %s456 = smul.addr %s455, 4
        %s457 = smul.addr %s456, 4
        %s458 = scalar_lea.vmem %s7, %s457
        %p459 = pneg %p232
        %p460 = pneg %p229
        %p461 = scmp.lt.s32.totalorder %s27, 1
        %s462 = scalar_select %p461, %s27, 1
        %s463 = scalar_lea.vmem %s8, %s462
        %p464 = pneg %p258
        %p465 = pneg %p255
        %p466 = scmp.lt.s32.totalorder %s27, 1
        %s467 = scalar_select %p466, %s27, 1
        %s468 = smul.addr %s467, 16
        %s469 = smul.addr %s468, 4
        %s470 = scalar_lea.vmem %s9, %s469
        %p471 = pneg %p284
        %p472 = pneg %p281
        %p473 = pneg %p310
        %p474 = pneg %p307
        %s475 = smul.u32 2, %s26
        %p476 = scmp.lt.s32.totalorder %s475, 1
        %s477 = scalar_select %p476, %s475, 1
        %s478 = smul.addr %s477, 8
        %s479 = scalar_lea.vmem %s0, %s478
        %s480 = smul.u32 2, %s26
        %p481 = scmp.lt.s32.totalorder %s27, 1
        %s482 = scalar_select %p481, %s27, 1
        %s483 = smul.addr %s482, 4
        %s484 = smul.addr %s483, 4
        %s485 = scalar_lea.vmem %s2, %s484
        %p486 = scmp.lt.s32.totalorder %s27, 1
        %s487 = scalar_select %p486, %s27, 1
        %s488 = smul.addr %s487, 4
        %s489 = smul.addr %s488, 4
        %s490 = scalar_lea.vmem %s3, %s489
        %p491 = scmp.lt.s32.totalorder %s27, 1
        %s492 = scalar_select %p491, %s27, 1
        %s493 = smul.addr %s492, 4
        %s494 = smul.addr %s493, 4
        %s495 = scalar_lea.vmem %s4, %s494
        %p496 = scmp.lt.s32.totalorder %s27, 1
        %s497 = scalar_select %p496, %s27, 1
        %s498 = smul.addr %s497, 4
        %s499 = smul.addr %s498, 4
        %s500 = scalar_lea.vmem %s5, %s499
        %p501 = scmp.lt.s32.totalorder %s27, 1
        %s502 = scalar_select %p501, %s27, 1
        %s503 = smul.addr %s502, 2
        %s504 = smul.addr %s503, 8
        %s505 = scalar_lea.vmem %s6, %s504
        %p506 = scmp.lt.s32.totalorder %s27, 1
        %s507 = scalar_select %p506, %s27, 1
        %s508 = smul.addr %s507, 4
        %s509 = smul.addr %s508, 4
        %s510 = scalar_lea.vmem %s7, %s509
        %p511 = scmp.lt.s32.totalorder %s27, 1
        %s512 = scalar_select %p511, %s27, 1
        %s513 = scalar_lea.vmem %s8, %s512
        %p514 = scmp.lt.s32.totalorder %s27, 1
        %s515 = scalar_select %p514, %s27, 1
        %s516 = smul.addr %s515, 16
        %s517 = smul.addr %s516, 4
        %s518 = scalar_lea.vmem %s9, %s517
        %s519 = smul.u32 2, %s26
        %p521 = scmp.eq.s32.totalorder %s27, 0
        // Predicated region
        $region61: #{tpu_custom_call.1} parent=59 // pred_check
          %p522 = pneg %p521
        $region62: #{tpu_custom_call.1} parent=59 // pred_check_branch
          %524 = sbr.rel (%p522) target = $region64
        $region63: #{tpu_custom_call.1} parent=59 // pred_region
          %v525 = vld [vmem:[%s479] sm:$0xff]
          %v526 = vld [vmem:[%s479 + $0x8] sm:$0xff]
          %v527 = vld [vmem:[%s1] sm:$0x1]
          %v528 = vld [vmem:[%s1 + $0x1] sm:$0x1]
          %vm529 = vcmask 261120
          %v530 = vsel %vm529, %v525, 0.0
          %531 = vadd.xlane.f32.xlu0 %v530
          %v532 = vpop.xlane.xlu0 %531
          %v533 = vsel %vm529, %v526, 0.0
          %534 = vadd.xlane.f32.xlu0 %v533
          %v535 = vpop.xlane.xlu0 %534
          %v536 = vrcp.pop 32.0
          %v537 = vmul.f32 %v532, %v536
          %v538 = vmul.f32 %v535, %v536
          %v539 = vsub.f32 %v525, %v537
          %v540 = vsub.f32 %v526, %v538
          %v541 = vmul.f32 %v539, %v539
          %v542 = vmul.f32 %v540, %v540
          %v543 = vsel %vm529, %v541, 0.0
          %544 = vadd.xlane.f32.xlu0 %v543
          %v545 = vpop.xlane.xlu0 %544
          %v546 = vsel %vm529, %v542, 0.0
          %547 = vadd.xlane.f32.xlu0 %v546
          %v548 = vpop.xlane.xlu0 %547
          %v549 = vmul.f32 %v545, %v536
          %v550 = vmul.f32 %v548, %v536
          %v551 = vadd.f32 %v549, 1e-12
          %v552 = vadd.f32 %v550, 1e-12
          %v553 = vrsqrt.pop %v551
          %v554 = vrsqrt.pop %v552
          %v555 = vmul.f32 %v539, %v553
          %v556 = vmul.f32 %v540, %v554
          %v557 = vlaneseq
          %v558 = vshrl.u32 %v557, 7
          %v559 = vsub.s32 0, %v558
          %v560 = vrot.slane %v527, %v559
          %v561 = vmul.f32 %v555, %v560
          %v562 = vmul.f32 %v556, %v560
          %v563 = vlaneseq
          %v564 = vshrl.u32 %v563, 7
          %v565 = vsub.s32 0, %v564
          %v566 = vrot.slane %v528, %v565
          %v567 = vadd.f32 %v561, %v566
          %v568 = vadd.f32 %v562, %v566
          %569 = vst.msk [vmem:[#allocation2] sm:$0xff] %vm529, %v567
          %570 = vst.msk [vmem:[#allocation2 + $0x8] sm:$0xff] %vm529, %v568
        $region64: #{tpu_custom_call.1} parent=59 // pred_fallthru
          _
        %v571 = vld [vmem:[#allocation2] sm:$0xff]
        %v572 = vld [vmem:[#allocation2 + $0x8] sm:$0xff]
        %v573 = vld [vmem:[%s505] sm:$0xff]
        %v574 = vld [vmem:[%s505 + $0x8] sm:$0x1]
        %v575 = vpack.c.bf16 %v572, %v571
        %v576 = vld [vmem:[%s485] sm:$0xf]
        %v577 = vld [vmem:[%s485 + $0x4] sm:$0xf]
        %v578 = vld [vmem:[%s485 + $0x8] sm:$0xf]
        %v579 = vld [vmem:[%s485 + $0xc] sm:$0xf]
        %v580 = vlaneseq
        %v581 = vshrl.u32 %v580, 7
        %v582 = vsub.s32 0, %v581
        %v583 = vrot.slane %v573, %v582
        %v588 = vunpack.c.l.b16 %v576
        %v589 = vunpack.c.l.b16 %v577
        %v590 = vunpack.c.l.b16 %v578
        %v591 = vunpack.c.l.b16 %v579
        %v592 = vpack.c.b16 %v589, %v588
        %v593 = vpack.c.b16 %v591, %v590
        %vm596 = vcmask 261120
        %v598 = vsel %vm596, %v575, 0
        %600 = vmatprep.subr.bf16.mxu0 0
        %601 = vmatpush1.bf16.msra.mxu0 %v592
        %602 = vmatprep.subr.bf16.mxu0 0
        %603 = vmatpush1.bf16.msra.mxu0 %v593
        %604 = vmatprep.subr.bf16.mxu0 0
        %605 = vmatpush1.bf16.msra.mxu0 0
        %606 = vmatprep.subr.bf16.mxu0 0
        %607 = vmatpush1.bf16.msra.mxu0 0
        %608 = vmatprep.subr.bf16.mxu0 0
        %609 = vmatpush1.bf16.msra.mxu0 0
        %610 = vmatprep.subr.bf16.mxu0 0
        %611 = vmatpush1.bf16.msra.mxu0 0
        %612 = vmatprep.subr.bf16.mxu0 0
        %613 = vmatpush1.bf16.msra.mxu0 0
        %614 = vmatprep.subr.bf16.mxu0 0
        %615 = vmatpush1.bf16.msra.mxu0 0
        %616 = vmatprep.subr.bf16.mxu0 0
        %617 = vmatpush1.bf16.msra.mxu0 0
        %618 = vmatprep.subr.bf16.mxu0 0
        %619 = vmatpush1.bf16.msra.mxu0 0
        %620 = vmatprep.subr.bf16.mxu0 0
        %621 = vmatpush1.bf16.msra.mxu0 0
        %622 = vmatprep.subr.bf16.mxu0 0
        %623 = vmatpush1.bf16.msra.mxu0 0
        %624 = vmatprep.subr.bf16.mxu0 0
        %625 = vmatpush1.bf16.msra.mxu0 0
        %626 = vmatprep.subr.bf16.mxu0 0
        %627 = vmatpush1.bf16.msra.mxu0 0
        %628 = vmatprep.subr.bf16.mxu0 0
        %629 = vmatpush1.bf16.msra.mxu0 0
        %630 = vmatprep.subr.bf16.mxu0 0
        %631 = vmatpush1.bf16.msra.mxu0 0
        %632 = vmatprep.mubr.bf16.mxu0 0
        %633 = vmatmul.mubr.bf16.gmra.mrb[0].mxu0 %v598
        %v634 = vpop.f32.mrb[0].mxu0
        %v635 = vadd.f32 %v583, %v634
        %v636 = vpop.f32.mrb[0].mxu0
        %v637 = vpop.f32.mrb[0].mxu0
        %v638 = vadd.f32 %v583, %v637
        %v639 = vpop.f32.mrb[0].mxu0
        %640 = vdwg.mxu0
        %v641 = vmul.f32 %v635, 0.25
        %v642 = vmul.f32 %v638, 0.25
        %v643 = vld [vmem:[%s490] sm:$0xf]
        %v644 = vld [vmem:[%s490 + $0x4] sm:$0xf]
        %v645 = vld [vmem:[%s490 + $0x8] sm:$0xf]
        %v646 = vld [vmem:[%s490 + $0xc] sm:$0xf]
        %v647 = vlaneseq
        %v648 = vshrl.u32 %v647, 7
        %v649 = vsub.s32 1, %v648
        %v650 = vrot.slane %v573, %v649
        %v655 = vunpack.c.l.b16 %v643
        %v656 = vunpack.c.l.b16 %v644
        %v657 = vunpack.c.l.b16 %v645
        %v658 = vunpack.c.l.b16 %v646
        %v659 = vpack.c.b16 %v656, %v655
        %v660 = vpack.c.b16 %v658, %v657
        %663 = vmatprep.subr.bf16.mxu0 0
        %664 = vmatpush1.bf16.msra.mxu0 %v659
        %665 = vmatprep.subr.bf16.mxu0 0
        %666 = vmatpush1.bf16.msra.mxu0 %v660
        %667 = vmatprep.subr.bf16.mxu0 0
        %668 = vmatpush1.bf16.msra.mxu0 0
        %669 = vmatprep.subr.bf16.mxu0 0
        %670 = vmatpush1.bf16.msra.mxu0 0
        %671 = vmatprep.subr.bf16.mxu0 0
        %672 = vmatpush1.bf16.msra.mxu0 0
        %673 = vmatprep.subr.bf16.mxu0 0
        %674 = vmatpush1.bf16.msra.mxu0 0
        %675 = vmatprep.subr.bf16.mxu0 0
        %676 = vmatpush1.bf16.msra.mxu0 0
        %677 = vmatprep.subr.bf16.mxu0 0
        %678 = vmatpush1.bf16.msra.mxu0 0
        %679 = vmatprep.subr.bf16.mxu0 0
        %680 = vmatpush1.bf16.msra.mxu0 0
        %681 = vmatprep.subr.bf16.mxu0 0
        %682 = vmatpush1.bf16.msra.mxu0 0
        %683 = vmatprep.subr.bf16.mxu0 0
        %684 = vmatpush1.bf16.msra.mxu0 0
        %685 = vmatprep.subr.bf16.mxu0 0
        %686 = vmatpush1.bf16.msra.mxu0 0
        %687 = vmatprep.subr.bf16.mxu0 0
        %688 = vmatpush1.bf16.msra.mxu0 0
        %689 = vmatprep.subr.bf16.mxu0 0
        %690 = vmatpush1.bf16.msra.mxu0 0
        %691 = vmatprep.subr.bf16.mxu0 0
        %692 = vmatpush1.bf16.msra.mxu0 0
        %693 = vmatprep.subr.bf16.mxu0 0
        %694 = vmatpush1.bf16.msra.mxu0 0
        %695 = vmatprep.mubr.bf16.mxu0 0
        %696 = vmatmul.mubr.bf16.gmra.mrb[0].mxu0 %v598
        %v697 = vpop.f32.mrb[0].mxu0
        %v698 = vadd.f32 %v650, %v697
        %v699 = vpop.f32.mrb[0].mxu0
        %v700 = vpop.f32.mrb[0].mxu0
        %v701 = vadd.f32 %v650, %v700
        %v702 = vpop.f32.mrb[0].mxu0
        %703 = vdwg.mxu0
        %v704 = vld [vmem:[%s495] sm:$0xf]
        %v705 = vld [vmem:[%s495 + $0x4] sm:$0xf]
        %v706 = vld [vmem:[%s495 + $0x8] sm:$0xf]
        %v707 = vld [vmem:[%s495 + $0xc] sm:$0xf]
        %v708 = vlaneseq
        %v709 = vshrl.u32 %v708, 7
        %v710 = vsub.s32 2, %v709
        %v711 = vrot.slane %v573, %v710
        %v716 = vunpack.c.l.b16 %v704
        %v717 = vunpack.c.l.b16 %v705
        %v718 = vunpack.c.l.b16 %v706
        %v719 = vunpack.c.l.b16 %v707
        %v720 = vpack.c.b16 %v717, %v716
        %v721 = vpack.c.b16 %v719, %v718
        %724 = vmatprep.subr.bf16.mxu0 0
        %725 = vmatpush1.bf16.msra.mxu0 %v720
        %726 = vmatprep.subr.bf16.mxu0 0
        %727 = vmatpush1.bf16.msra.mxu0 %v721
        %728 = vmatprep.subr.bf16.mxu0 0
        %729 = vmatpush1.bf16.msra.mxu0 0
        %730 = vmatprep.subr.bf16.mxu0 0
        %731 = vmatpush1.bf16.msra.mxu0 0
        %732 = vmatprep.subr.bf16.mxu0 0
        %733 = vmatpush1.bf16.msra.mxu0 0
        %734 = vmatprep.subr.bf16.mxu0 0
        %735 = vmatpush1.bf16.msra.mxu0 0
        %736 = vmatprep.subr.bf16.mxu0 0
        %737 = vmatpush1.bf16.msra.mxu0 0
        %738 = vmatprep.subr.bf16.mxu0 0
        %739 = vmatpush1.bf16.msra.mxu0 0
        %740 = vmatprep.subr.bf16.mxu0 0
        %741 = vmatpush1.bf16.msra.mxu0 0
        %742 = vmatprep.subr.bf16.mxu0 0
        %743 = vmatpush1.bf16.msra.mxu0 0
        %744 = vmatprep.subr.bf16.mxu0 0
        %745 = vmatpush1.bf16.msra.mxu0 0
        %746 = vmatprep.subr.bf16.mxu0 0
        %747 = vmatpush1.bf16.msra.mxu0 0
        %748 = vmatprep.subr.bf16.mxu0 0
        %749 = vmatpush1.bf16.msra.mxu0 0
        %750 = vmatprep.subr.bf16.mxu0 0
        %751 = vmatpush1.bf16.msra.mxu0 0
        %752 = vmatprep.subr.bf16.mxu0 0
        %753 = vmatpush1.bf16.msra.mxu0 0
        %754 = vmatprep.subr.bf16.mxu0 0
        %755 = vmatpush1.bf16.msra.mxu0 0
        %756 = vmatprep.mubr.bf16.mxu0 0
        %757 = vmatmul.mubr.bf16.gmra.mrb[0].mxu0 %v598
        %v758 = vpop.f32.mrb[0].mxu0
        %v759 = vadd.f32 %v711, %v758
        %v760 = vpop.f32.mrb[0].mxu0
        %v761 = vpop.f32.mrb[0].mxu0
        %v762 = vadd.f32 %v711, %v761
        %v763 = vpop.f32.mrb[0].mxu0
        %764 = vdwg.mxu0
        %v765 = vpack.c.bf16 %v642, %v641
        %v766 = vpack.c.bf16 %v701, %v698
        %v767 = vpack.c.bf16 %v762, %v759
        %v769 = vunpack.c.l.b16 %v765
        %v770 = vunpack.c.h.b16 %v765
        %v771 = vpack.c.b16 %v769, %v769
        %v772 = vpack.c.b16 %v770, %v770
        %v774 = vunpack.c.l.b16 %v766
        %v775 = vunpack.c.h.b16 %v766
        %v776 = vpack.c.b16 %v774, %v774
        %v777 = vpack.c.b16 %v775, %v775
        %v779 = vunpack.c.l.b16 %v767
        %v780 = vunpack.c.h.b16 %v767
        %v781 = vpack.c.b16 %v779, %v779
        %v782 = vpack.c.b16 %v780, %v780
        %vm783 = vcmask 130048
        %v785 = vsel %vm783, %v771, 0
        %v788 = vsel %vm783, %v776, 0
        %790 = vmatprep.subr.bf16.mxu0 0
        %791 = vmatpush1.bf16.xpose.msra.mxu0 %v788
        %792 = vmatprep.subr.bf16.mxu0 0
        %793 = vmatpush1.bf16.xpose.msra.mxu0 0
        %794 = vmatprep.subr.bf16.mxu0 0
        %795 = vmatpush1.bf16.xpose.msra.mxu0 0
        %796 = vmatprep.subr.bf16.mxu0 0
        %797 = vmatpush1.bf16.xpose.msra.mxu0 0
        %798 = vmatprep.subr.bf16.mxu0 0
        %799 = vmatpush1.bf16.xpose.msra.mxu0 0
        %800 = vmatprep.subr.bf16.mxu0 0
        %801 = vmatpush1.bf16.xpose.msra.mxu0 0
        %802 = vmatprep.subr.bf16.mxu0 0
        %803 = vmatpush1.bf16.xpose.msra.mxu0 0
        %804 = vmatprep.subr.bf16.mxu0 0
        %805 = vmatpush1.bf16.xpose.msra.mxu0 0
        %806 = vmatprep.subr.bf16.mxu0 0
        %807 = vmatpush1.bf16.xpose.msra.mxu0 0
        %808 = vmatprep.subr.bf16.mxu0 0
        %809 = vmatpush1.bf16.xpose.msra.mxu0 0
        %810 = vmatprep.subr.bf16.mxu0 0
        %811 = vmatpush1.bf16.xpose.msra.mxu0 0
        %812 = vmatprep.subr.bf16.mxu0 0
        %813 = vmatpush1.bf16.xpose.msra.mxu0 0
        %814 = vmatprep.subr.bf16.mxu0 0
        %815 = vmatpush1.bf16.xpose.msra.mxu0 0
        %816 = vmatprep.subr.bf16.mxu0 0
        %817 = vmatpush1.bf16.xpose.msra.mxu0 0
        %818 = vmatprep.subr.bf16.mxu0 0
        %819 = vmatpush1.bf16.xpose.msra.mxu0 0
        %820 = vmatprep.subr.bf16.mxu0 0
        %821 = vmatpush1.bf16.xpose.msra.mxu0 0
        %822 = vmatprep.mubr.bf16.mxu0 0
        %823 = vmatmul.mubr.bf16.gmra.mrb[0].mxu0 %v785
        %v824 = vpop.f32.mrb[0].mxu0
        %v825 = vadd.f32 0.0, %v824
        %v826 = vpop.f32.mrb[0].mxu0
        %v827 = vpop.f32.mrb[0].mxu0
        %v828 = vpop.f32.mrb[0].mxu0
        %829 = vdwg.mxu0
        %v831 = vsel %vm783, %v772, 0
        %v834 = vsel %vm783, %v777, 0
        %836 = vmatprep.subr.bf16.mxu0 0
        %837 = vmatpush1.bf16.xpose.msra.mxu0 %v834
        %838 = vmatprep.subr.bf16.mxu0 0
        %839 = vmatpush1.bf16.xpose.msra.mxu0 0
        %840 = vmatprep.subr.bf16.mxu0 0
        %841 = vmatpush1.bf16.xpose.msra.mxu0 0
        %842 = vmatprep.subr.bf16.mxu0 0
        %843 = vmatpush1.bf16.xpose.msra.mxu0 0
        %844 = vmatprep.subr.bf16.mxu0 0
        %845 = vmatpush1.bf16.xpose.msra.mxu0 0
        %846 = vmatprep.subr.bf16.mxu0 0
        %847 = vmatpush1.bf16.xpose.msra.mxu0 0
        %848 = vmatprep.subr.bf16.mxu0 0
        %849 = vmatpush1.bf16.xpose.msra.mxu0 0
        %850 = vmatprep.subr.bf16.mxu0 0
        %851 = vmatpush1.bf16.xpose.msra.mxu0 0
        %852 = vmatprep.subr.bf16.mxu0 0
        %853 = vmatpush1.bf16.xpose.msra.mxu0 0
        %854 = vmatprep.subr.bf16.mxu0 0
        %855 = vmatpush1.bf16.xpose.msra.mxu0 0
        %856 = vmatprep.subr.bf16.mxu0 0
        %857 = vmatpush1.bf16.xpose.msra.mxu0 0
        %858 = vmatprep.subr.bf16.mxu0 0
        %859 = vmatpush1.bf16.xpose.msra.mxu0 0
        %860 = vmatprep.subr.bf16.mxu0 0
        %861 = vmatpush1.bf16.xpose.msra.mxu0 0
        %862 = vmatprep.subr.bf16.mxu0 0
        %863 = vmatpush1.bf16.xpose.msra.mxu0 0
        %864 = vmatprep.subr.bf16.mxu0 0
        %865 = vmatpush1.bf16.xpose.msra.mxu0 0
        %866 = vmatprep.subr.bf16.mxu0 0
        %867 = vmatpush1.bf16.xpose.msra.mxu0 0
        %868 = vmatprep.mubr.bf16.mxu0 0
        %869 = vmatmul.mubr.bf16.gmra.mrb[0].mxu0 %v831
        %v870 = vpop.f32.mrb[0].mxu0
        %v871 = vadd.f32 0.0, %v870
        %v872 = vpop.f32.mrb[0].mxu0
        %v873 = vpop.f32.mrb[0].mxu0
        %v874 = vpop.f32.mrb[0].mxu0
        %875 = vdwg.mxu0
        %vm876 = vcmask 64512
        %v877 = vsel %vm876, %v825, -inf
        %878 = vmax.xlane.f32.xlu0 %v877
        %v879 = vpop.xlane.xlu0 %878
        %v880 = vsel %vm876, %v871, -inf
        %881 = vmax.xlane.f32.xlu0 %v880
        %v882 = vpop.xlane.xlu0 %881
        %v883 = vsub.f32 %v825, %v879
        %v884 = vsub.f32 %v871, %v882
        %v885 = vmul.f32 %v883, 1.442695
        %v886 = vpow.pop %v885
        %v887 = vmul.f32 %v884, 1.442695
        %v888 = vpow.pop %v887
        %v889 = vsel %vm876, %v886, 0.0
        %890 = vadd.xlane.f32.xlu0 %v889
        %v891 = vpop.xlane.xlu0 %890
        %v892 = vsel %vm876, %v888, 0.0
        %893 = vadd.xlane.f32.xlu0 %v892
        %v894 = vpop.xlane.xlu0 %893
        %v895 = vrcp.pop %v891
        %v896 = vrcp.pop %v894
        %v897 = vmul.f32 %v886, %v895
        %v898 = vmul.f32 %v888, %v896
        %v899 = vpack.c.bf16 %v897, %v897
        %v900 = vpack.c.bf16 %v898, %v898
        %v902 = vsel %vm876, %v899, 0
        %vm904 = vcmask 1043456
        %v906 = vsel %vm904, %v781, 0
        %908 = vmatprep.subr.bf16.mxu0 0
        %909 = vmatpush1.bf16.msra.mxu0 %v906
        %910 = vmatprep.subr.bf16.mxu0 0
        %911 = vmatpush1.bf16.msra.mxu0 0
        %912 = vmatprep.subr.bf16.mxu0 0
        %913 = vmatpush1.bf16.msra.mxu0 0
        %914 = vmatprep.subr.bf16.mxu0 0
        %915 = vmatpush1.bf16.msra.mxu0 0
        %916 = vmatprep.subr.bf16.mxu0 0
        %917 = vmatpush1.bf16.msra.mxu0 0
        %918 = vmatprep.subr.bf16.mxu0 0
        %919 = vmatpush1.bf16.msra.mxu0 0
        %920 = vmatprep.subr.bf16.mxu0 0
        %921 = vmatpush1.bf16.msra.mxu0 0
        %922 = vmatprep.subr.bf16.mxu0 0
        %923 = vmatpush1.bf16.msra.mxu0 0
        %924 = vmatprep.subr.bf16.mxu0 0
        %925 = vmatpush1.bf16.msra.mxu0 0
        %926 = vmatprep.subr.bf16.mxu0 0
        %927 = vmatpush1.bf16.msra.mxu0 0
        %928 = vmatprep.subr.bf16.mxu0 0
        %929 = vmatpush1.bf16.msra.mxu0 0
        %930 = vmatprep.subr.bf16.mxu0 0
        %931 = vmatpush1.bf16.msra.mxu0 0
        %932 = vmatprep.subr.bf16.mxu0 0
        %933 = vmatpush1.bf16.msra.mxu0 0
        %934 = vmatprep.subr.bf16.mxu0 0
        %935 = vmatpush1.bf16.msra.mxu0 0
        %936 = vmatprep.subr.bf16.mxu0 0
        %937 = vmatpush1.bf16.msra.mxu0 0
        %938 = vmatprep.subr.bf16.mxu0 0
        %939 = vmatpush1.bf16.msra.mxu0 0
        %940 = vmatprep.mubr.bf16.mxu0 0
        %941 = vmatmul.mubr.bf16.gmra.mrb[0].mxu0 %v902
        %v942 = vpop.f32.mrb[0].mxu0
        %v943 = vadd.f32 0.0, %v942
        %v944 = vpop.f32.mrb[0].mxu0
        %v945 = vpop.f32.mrb[0].mxu0
        %v946 = vpop.f32.mrb[0].mxu0
        %947 = vdwg.mxu0
        %v949 = vsel %vm876, %v900, 0
        %v952 = vsel %vm904, %v782, 0
        %954 = vmatprep.subr.bf16.mxu0 0
        %955 = vmatpush1.bf16.msra.mxu0 %v952
        %956 = vmatprep.subr.bf16.mxu0 0
        %957 = vmatpush1.bf16.msra.mxu0 0
        %958 = vmatprep.subr.bf16.mxu0 0
        %959 = vmatpush1.bf16.msra.mxu0 0
        %960 = vmatprep.subr.bf16.mxu0 0
        %961 = vmatpush1.bf16.msra.mxu0 0
        %962 = vmatprep.subr.bf16.mxu0 0
        %963 = vmatpush1.bf16.msra.mxu0 0
        %964 = vmatprep.subr.bf16.mxu0 0
        %965 = vmatpush1.bf16.msra.mxu0 0
        %966 = vmatprep.subr.bf16.mxu0 0
        %967 = vmatpush1.bf16.msra.mxu0 0
        %968 = vmatprep.subr.bf16.mxu0 0
        %969 = vmatpush1.bf16.msra.mxu0 0
        %970 = vmatprep.subr.bf16.mxu0 0
        %971 = vmatpush1.bf16.msra.mxu0 0
        %972 = vmatprep.subr.bf16.mxu0 0
        %973 = vmatpush1.bf16.msra.mxu0 0
        %974 = vmatprep.subr.bf16.mxu0 0
        %975 = vmatpush1.bf16.msra.mxu0 0
        %976 = vmatprep.subr.bf16.mxu0 0
        %977 = vmatpush1.bf16.msra.mxu0 0
        %978 = vmatprep.subr.bf16.mxu0 0
        %979 = vmatpush1.bf16.msra.mxu0 0
        %980 = vmatprep.subr.bf16.mxu0 0
        %981 = vmatpush1.bf16.msra.mxu0 0
        %982 = vmatprep.subr.bf16.mxu0 0
        %983 = vmatpush1.bf16.msra.mxu0 0
        %984 = vmatprep.subr.bf16.mxu0 0
        %985 = vmatpush1.bf16.msra.mxu0 0
        %986 = vmatprep.mubr.bf16.mxu0 0
        %987 = vmatmul.mubr.bf16.gmra.mrb[0].mxu0 %v949
        %v988 = vpop.f32.mrb[0].mxu0
        %v989 = vadd.f32 0.0, %v988
        %v990 = vpop.f32.mrb[0].mxu0
        %v991 = vpop.f32.mrb[0].mxu0
        %v992 = vpop.f32.mrb[0].mxu0
        %993 = vdwg.mxu0
        %v994 = vpack.c.bf16 %v989, %v943
        %995 = vst.msk [vmem:[#allocation3] sm:$0xff] %vm783, %v994
        %996 = vrot.lane.b32.xlu0 %v771, 112
        %v997 = vpop.permute.xlu0 %996
        %998 = vrot.lane.b32.xlu0 %v776, 112
        %v999 = vpop.permute.xlu0 %998
        %v1001 = vsel %vm783, %v997, 0
        %v1004 = vsel %vm783, %v999, 0
        %1006 = vmatprep.subr.bf16.mxu0 0
        %1007 = vmatpush1.bf16.xpose.msra.mxu0 %v1004
        %1008 = vmatprep.subr.bf16.mxu0 0
        %1009 = vmatpush1.bf16.xpose.msra.mxu0 0
        %1010 = vmatprep.subr.bf16.mxu0 0
        %1011 = vmatpush1.bf16.xpose.msra.mxu0 0
        %1012 = vmatprep.subr.bf16.mxu0 0
        %1013 = vmatpush1.bf16.xpose.msra.mxu0 0
        %1014 = vmatprep.subr.bf16.mxu0 0
        %1015 = vmatpush1.bf16.xpose.msra.mxu0 0
        %1016 = vmatprep.subr.bf16.mxu0 0
        %1017 = vmatpush1.bf16.xpose.msra.mxu0 0
        %1018 = vmatprep.subr.bf16.mxu0 0
        %1019 = vmatpush1.bf16.xpose.msra.mxu0 0
        %1020 = vmatprep.subr.bf16.mxu0 0
        %1021 = vmatpush1.bf16.xpose.msra.mxu0 0
        %1022 = vmatprep.subr.bf16.mxu0 0
        %1023 = vmatpush1.bf16.xpose.msra.mxu0 0
        %1024 = vmatprep.subr.bf16.mxu0 0
        %1025 = vmatpush1.bf16.xpose.msra.mxu0 0
        %1026 = vmatprep.subr.bf16.mxu0 0
        %1027 = vmatpush1.bf16.xpose.msra.mxu0 0
        %1028 = vmatprep.subr.bf16.mxu0 0
        %1029 = vmatpush1.bf16.xpose.msra.mxu0 0
        %1030 = vmatprep.subr.bf16.mxu0 0
        %1031 = vmatpush1.bf16.xpose.msra.mxu0 0
        %1032 = vmatprep.subr.bf16.mxu0 0
        %1033 = vmatpush1.bf16.xpose.msra.mxu0 0
        %1034 = vmatprep.subr.bf16.mxu0 0
        %1035 = vmatpush1.bf16.xpose.msra.mxu0 0
        %1036 = vmatprep.subr.bf16.mxu0 0
        %1037 = vmatpush1.bf16.xpose.msra.mxu0 0
        %1038 = vmatprep.mubr.bf16.mxu0 0
        %1039 = vmatmul.mubr.bf16.gmra.mrb[0].mxu0 %v1001
        %v1040 = vpop.f32.mrb[0].mxu0
        %v1041 = vadd.f32 0.0, %v1040
        %v1042 = vpop.f32.mrb[0].mxu0
        %v1043 = vpop.f32.mrb[0].mxu0
        %v1044 = vpop.f32.mrb[0].mxu0
        %1045 = vdwg.mxu0
        %1046 = vrot.lane.b32.xlu0 %v772, 112
        %v1047 = vpop.permute.xlu0 %1046
        %1048 = vrot.lane.b32.xlu0 %v777, 112
        %v1049 = vpop.permute.xlu0 %1048
        %v1051 = vsel %vm783, %v1047, 0
        %v1054 = vsel %vm783, %v1049, 0
        %1056 = vmatprep.subr.bf16.mxu0 0
        %1057 = vmatpush1.bf16.xpose.msra.mxu0 %v1054
        %1058 = vmatprep.subr.bf16.mxu0 0
        %1059 = vmatpush1.bf16.xpose.msra.mxu0 0
        %1060 = vmatprep.subr.bf16.mxu0 0
        %1061 = vmatpush1.bf16.xpose.msra.mxu0 0
        %1062 = vmatprep.subr.bf16.mxu0 0
        %1063 = vmatpush1.bf16.xpose.msra.mxu0 0
        %1064 = vmatprep.subr.bf16.mxu0 0
        %1065 = vmatpush1.bf16.xpose.msra.mxu0 0
        %1066 = vmatprep.subr.bf16.mxu0 0
        %1067 = vmatpush1.bf16.xpose.msra.mxu0 0
        %1068 = vmatprep.subr.bf16.mxu0 0
        %1069 = vmatpush1.bf16.xpose.msra.mxu0 0
        %1070 = vmatprep.subr.bf16.mxu0 0
        %1071 = vmatpush1.bf16.xpose.msra.mxu0 0
        %1072 = vmatprep.subr.bf16.mxu0 0
        %1073 = vmatpush1.bf16.xpose.msra.mxu0 0
        %1074 = vmatprep.subr.bf16.mxu0 0
        %1075 = vmatpush1.bf16.xpose.msra.mxu0 0
        %1076 = vmatprep.subr.bf16.mxu0 0
        %1077 = vmatpush1.bf16.xpose.msra.mxu0 0
        %1078 = vmatprep.subr.bf16.mxu0 0
        %1079 = vmatpush1.bf16.xpose.msra.mxu0 0
        %1080 = vmatprep.subr.bf16.mxu0 0
        %1081 = vmatpush1.bf16.xpose.msra.mxu0 0
        %1082 = vmatprep.subr.bf16.mxu0 0
        %1083 = vmatpush1.bf16.xpose.msra.mxu0 0
        %1084 = vmatprep.subr.bf16.mxu0 0
        %1085 = vmatpush1.bf16.xpose.msra.mxu0 0
        %1086 = vmatprep.subr.bf16.mxu0 0
        %1087 = vmatpush1.bf16.xpose.msra.mxu0 0
        %1088 = vmatprep.mubr.bf16.mxu0 0
        %1089 = vmatmul.mubr.bf16.gmra.mrb[0].mxu0 %v1051
        %v1090 = vpop.f32.mrb[0].mxu0
        %v1091 = vadd.f32 0.0, %v1090
        %v1092 = vpop.f32.mrb[0].mxu0
        %v1093 = vpop.f32.mrb[0].mxu0
        %v1094 = vpop.f32.mrb[0].mxu0
        %1095 = vdwg.mxu0
        %v1096 = vsel %vm876, %v1041, -inf
        %1097 = vmax.xlane.f32.xlu0 %v1096
        %v1098 = vpop.xlane.xlu0 %1097
        %v1099 = vsel %vm876, %v1091, -inf
        %1100 = vmax.xlane.f32.xlu0 %v1099
        %v1101 = vpop.xlane.xlu0 %1100
        %v1102 = vsub.f32 %v1041, %v1098
        %v1103 = vsub.f32 %v1091, %v1101
        %v1104 = vmul.f32 %v1102, 1.442695
        %v1105 = vpow.pop %v1104
        %v1106 = vmul.f32 %v1103, 1.442695
        %v1107 = vpow.pop %v1106
        %v1108 = vsel %vm876, %v1105, 0.0
        %1109 = vadd.xlane.f32.xlu0 %v1108
        %v1110 = vpop.xlane.xlu0 %1109
        %v1111 = vsel %vm876, %v1107, 0.0
        %1112 = vadd.xlane.f32.xlu0 %v1111
        %v1113 = vpop.xlane.xlu0 %1112
        %v1114 = vrcp.pop %v1110
        %v1115 = vrcp.pop %v1113
        %v1116 = vmul.f32 %v1105, %v1114
        %v1117 = vmul.f32 %v1107, %v1115
        %v1118 = vpack.c.bf16 %v1116, %v1116
        %v1119 = vpack.c.bf16 %v1117, %v1117
        %1120 = vrot.lane.b32.xlu0 %v781, 112
        %v1121 = vpop.permute.xlu0 %1120
        %v1123 = vsel %vm876, %v1118, 0
        %v1126 = vsel %vm904, %v1121, 0
        %1128 = vmatprep.subr.bf16.mxu0 0
        %1129 = vmatpush1.bf16.msra.mxu0 %v1126
        %1130 = vmatprep.subr.bf16.mxu0 0
        %1131 = vmatpush1.bf16.msra.mxu0 0
        %1132 = vmatprep.subr.bf16.mxu0 0
        %1133 = vmatpush1.bf16.msra.mxu0 0
        %1134 = vmatprep.subr.bf16.mxu0 0
        %1135 = vmatpush1.bf16.msra.mxu0 0
        %1136 = vmatprep.subr.bf16.mxu0 0
        %1137 = vmatpush1.bf16.msra.mxu0 0
        %1138 = vmatprep.subr.bf16.mxu0 0
        %1139 = vmatpush1.bf16.msra.mxu0 0
        %1140 = vmatprep.subr.bf16.mxu0 0
        %1141 = vmatpush1.bf16.msra.mxu0 0
        %1142 = vmatprep.subr.bf16.mxu0 0
        %1143 = vmatpush1.bf16.msra.mxu0 0
        %1144 = vmatprep.subr.bf16.mxu0 0
        %1145 = vmatpush1.bf16.msra.mxu0 0
        %1146 = vmatprep.subr.bf16.mxu0 0
        %1147 = vmatpush1.bf16.msra.mxu0 0
        %1148 = vmatprep.subr.bf16.mxu0 0
        %1149 = vmatpush1.bf16.msra.mxu0 0
        %1150 = vmatprep.subr.bf16.mxu0 0
        %1151 = vmatpush1.bf16.msra.mxu0 0
        %1152 = vmatprep.subr.bf16.mxu0 0
        %1153 = vmatpush1.bf16.msra.mxu0 0
        %1154 = vmatprep.subr.bf16.mxu0 0
        %1155 = vmatpush1.bf16.msra.mxu0 0
        %1156 = vmatprep.subr.bf16.mxu0 0
        %1157 = vmatpush1.bf16.msra.mxu0 0
        %1158 = vmatprep.subr.bf16.mxu0 0
        %1159 = vmatpush1.bf16.msra.mxu0 0
        %1160 = vmatprep.mubr.bf16.mxu0 0
        %1161 = vmatmul.mubr.bf16.gmra.mrb[0].mxu0 %v1123
        %v1162 = vpop.f32.mrb[0].mxu0
        %v1163 = vadd.f32 0.0, %v1162
        %v1164 = vpop.f32.mrb[0].mxu0
        %v1165 = vpop.f32.mrb[0].mxu0
        %v1166 = vpop.f32.mrb[0].mxu0
        %1167 = vdwg.mxu0
        %1168 = vrot.lane.b32.xlu0 %v782, 112
        %v1169 = vpop.permute.xlu0 %1168
        %v1171 = vsel %vm876, %v1119, 0
        %v1174 = vsel %vm904, %v1169, 0
        %1176 = vmatprep.subr.bf16.mxu0 0
        %1177 = vmatpush1.bf16.msra.mxu0 %v1174
        %1178 = vmatprep.subr.bf16.mxu0 0
        %1179 = vmatpush1.bf16.msra.mxu0 0
        %1180 = vmatprep.subr.bf16.mxu0 0
        %1181 = vmatpush1.bf16.msra.mxu0 0
        %1182 = vmatprep.subr.bf16.mxu0 0
        %1183 = vmatpush1.bf16.msra.mxu0 0
        %1184 = vmatprep.subr.bf16.mxu0 0
        %1185 = vmatpush1.bf16.msra.mxu0 0
        %1186 = vmatprep.subr.bf16.mxu0 0
        %1187 = vmatpush1.bf16.msra.mxu0 0
        %1188 = vmatprep.subr.bf16.mxu0 0
        %1189 = vmatpush1.bf16.msra.mxu0 0
        %1190 = vmatprep.subr.bf16.mxu0 0
        %1191 = vmatpush1.bf16.msra.mxu0 0
        %1192 = vmatprep.subr.bf16.mxu0 0
        %1193 = vmatpush1.bf16.msra.mxu0 0
        %1194 = vmatprep.subr.bf16.mxu0 0
        %1195 = vmatpush1.bf16.msra.mxu0 0
        %1196 = vmatprep.subr.bf16.mxu0 0
        %1197 = vmatpush1.bf16.msra.mxu0 0
        %1198 = vmatprep.subr.bf16.mxu0 0
        %1199 = vmatpush1.bf16.msra.mxu0 0
        %1200 = vmatprep.subr.bf16.mxu0 0
        %1201 = vmatpush1.bf16.msra.mxu0 0
        %1202 = vmatprep.subr.bf16.mxu0 0
        %1203 = vmatpush1.bf16.msra.mxu0 0
        %1204 = vmatprep.subr.bf16.mxu0 0
        %1205 = vmatpush1.bf16.msra.mxu0 0
        %1206 = vmatprep.subr.bf16.mxu0 0
        %1207 = vmatpush1.bf16.msra.mxu0 0
        %1208 = vmatprep.mubr.bf16.mxu0 0
        %1209 = vmatmul.mubr.bf16.gmra.mrb[0].mxu0 %v1171
        %v1210 = vpop.f32.mrb[0].mxu0
        %v1211 = vadd.f32 0.0, %v1210
        %v1212 = vpop.f32.mrb[0].mxu0
        %v1213 = vpop.f32.mrb[0].mxu0
        %v1214 = vpop.f32.mrb[0].mxu0
        %1215 = vdwg.mxu0
        %v1216 = vpack.c.bf16 %v1211, %v1163
        %1218 = vrot.lane.b32.xlu0 %v1216, 16
        %v1219 = vpop.permute.xlu0 %1218
        %vm1221 = vcmask 261248
        %1222 = vst.msk [vmem:[#allocation3] sm:$0xff] %vm1221, %v1219
        %v1223 = vld [vmem:[#allocation3] sm:$0xff]
        %v1224 = vld [vmem:[%s500] sm:$0xf]
        %v1225 = vld [vmem:[%s500 + $0x4] sm:$0xf]
        %v1226 = vld [vmem:[%s500 + $0x8] sm:$0xf]
        %v1227 = vld [vmem:[%s500 + $0xc] sm:$0xf]
        %v1228 = vlaneseq
        %v1229 = vshrl.u32 %v1228, 7
        %v1230 = vsub.s32 3, %v1229
        %v1231 = vrot.slane %v573, %v1230
        %v1236 = vunpack.c.l.b16 %v1224
        %v1237 = vunpack.c.l.b16 %v1225
        %v1238 = vunpack.c.l.b16 %v1226
        %v1239 = vunpack.c.l.b16 %v1227
        %v1240 = vpack.c.b16 %v1237, %v1236
        %v1241 = vpack.c.b16 %v1239, %v1238
        %v1245 = vsel %vm596, %v1223, 0
        %1247 = vmatprep.subr.bf16.mxu0 0
        %1248 = vmatpush1.bf16.msra.mxu0 %v1240
        %1249 = vmatprep.subr.bf16.mxu0 0
        %1250 = vmatpush1.bf16.msra.mxu0 %v1241
        %1251 = vmatprep.subr.bf16.mxu0 0
        %1252 = vmatpush1.bf16.msra.mxu0 0
        %1253 = vmatprep.subr.bf16.mxu0 0
        %1254 = vmatpush1.bf16.msra.mxu0 0
        %1255 = vmatprep.subr.bf16.mxu0 0
        %1256 = vmatpush1.bf16.msra.mxu0 0
        %1257 = vmatprep.subr.bf16.mxu0 0
        %1258 = vmatpush1.bf16.msra.mxu0 0
        %1259 = vmatprep.subr.bf16.mxu0 0
        %1260 = vmatpush1.bf16.msra.mxu0 0
        %1261 = vmatprep.subr.bf16.mxu0 0
        %1262 = vmatpush1.bf16.msra.mxu0 0
        %1263 = vmatprep.subr.bf16.mxu0 0
        %1264 = vmatpush1.bf16.msra.mxu0 0
        %1265 = vmatprep.subr.bf16.mxu0 0
        %1266 = vmatpush1.bf16.msra.mxu0 0
        %1267 = vmatprep.subr.bf16.mxu0 0
        %1268 = vmatpush1.bf16.msra.mxu0 0
        %1269 = vmatprep.subr.bf16.mxu0 0
        %1270 = vmatpush1.bf16.msra.mxu0 0
        %1271 = vmatprep.subr.bf16.mxu0 0
        %1272 = vmatpush1.bf16.msra.mxu0 0
        %1273 = vmatprep.subr.bf16.mxu0 0
        %1274 = vmatpush1.bf16.msra.mxu0 0
        %1275 = vmatprep.subr.bf16.mxu0 0
        %1276 = vmatpush1.bf16.msra.mxu0 0
        %1277 = vmatprep.subr.bf16.mxu0 0
        %1278 = vmatpush1.bf16.msra.mxu0 0
        %1279 = vmatprep.mubr.bf16.mxu0 0
        %1280 = vmatmul.mubr.bf16.gmra.mrb[0].mxu0 %v1245
        %v1281 = vpop.f32.mrb[0].mxu0
        %v1282 = vadd.f32 %v1231, %v1281
        %v1283 = vpop.f32.mrb[0].mxu0
        %v1284 = vpop.f32.mrb[0].mxu0
        %v1285 = vadd.f32 %v1231, %v1284
        %v1286 = vpop.f32.mrb[0].mxu0
        %1287 = vdwg.mxu0
        %v1288 = vadd.f32 %v571, %v1282
        %v1289 = vadd.f32 %v572, %v1285
        %v1290 = vsel %vm596, %v1288, 0.0
        %1291 = vadd.xlane.f32.xlu0 %v1290
        %v1292 = vpop.xlane.xlu0 %1291
        %v1293 = vsel %vm596, %v1289, 0.0
        %1294 = vadd.xlane.f32.xlu0 %v1293
        %v1295 = vpop.xlane.xlu0 %1294
        %v1296 = vrcp.pop 32.0
        %v1297 = vmul.f32 %v1292, %v1296
        %v1298 = vmul.f32 %v1295, %v1296
        %v1299 = vsub.f32 %v1288, %v1297
        %v1300 = vsub.f32 %v1289, %v1298
        %v1301 = vmul.f32 %v1299, %v1299
        %v1302 = vmul.f32 %v1300, %v1300
        %v1303 = vsel %vm596, %v1301, 0.0
        %1304 = vadd.xlane.f32.xlu0 %v1303
        %v1305 = vpop.xlane.xlu0 %1304
        %v1306 = vsel %vm596, %v1302, 0.0
        %1307 = vadd.xlane.f32.xlu0 %v1306
        %v1308 = vpop.xlane.xlu0 %1307
        %v1309 = vmul.f32 %v1305, %v1296
        %v1310 = vmul.f32 %v1308, %v1296
        %v1311 = vadd.f32 %v1309, 1e-12
        %v1312 = vadd.f32 %v1310, 1e-12
        %v1313 = vrsqrt.pop %v1311
        %v1314 = vrsqrt.pop %v1312
        %v1315 = vmul.f32 %v1299, %v1313
        %v1316 = vmul.f32 %v1300, %v1314
        %v1317 = vlaneseq
        %v1318 = vshrl.u32 %v1317, 7
        %v1319 = vsub.s32 4, %v1318
        %v1320 = vrot.slane %v573, %v1319
        %v1321 = vmul.f32 %v1315, %v1320
        %v1322 = vmul.f32 %v1316, %v1320
        %v1323 = vlaneseq
        %v1324 = vshrl.u32 %v1323, 7
        %v1325 = vsub.s32 5, %v1324
        %v1326 = vrot.slane %v573, %v1325
        %v1327 = vadd.f32 %v1321, %v1326
        %v1328 = vadd.f32 %v1322, %v1326
        %v1329 = vpack.c.bf16 %v1328, %v1327
        %v1330 = vld [vmem:[%s510] sm:$0xf]
        %v1331 = vld [vmem:[%s510 + $0x4] sm:$0xf]
        %v1332 = vld [vmem:[%s510 + $0x8] sm:$0xf]
        %v1333 = vld [vmem:[%s510 + $0xc] sm:$0xf]
        %v1334 = vld [vmem:[%s513] sm:$0x1]
        %v1336 = vlaneseq
        %v1337 = vshrl.u32 %v1336, 7
        %v1338 = vsub.s32 0, %v1337
        %v1339 = vrot.slane %v1334, %v1338
        %v1345 = vunpack.c.l.b16 %v1330
        %v1346 = vunpack.c.l.b16 %v1331
        %v1347 = vunpack.c.l.b16 %v1332
        %v1348 = vunpack.c.l.b16 %v1333
        %v1349 = vpack.c.b16 %v1346, %v1345
        %v1350 = vpack.c.b16 %v1348, %v1347
        %v1354 = vsel %vm596, %v1329, 0
        %1356 = vmatprep.subr.bf16.mxu0 0
        %1357 = vmatpush1.bf16.msra.mxu0 %v1349
        %1358 = vmatprep.subr.bf16.mxu0 0
        %1359 = vmatpush1.bf16.msra.mxu0 %v1350
        %1360 = vmatprep.subr.bf16.mxu0 0
        %1361 = vmatpush1.bf16.msra.mxu0 0
        %1362 = vmatprep.subr.bf16.mxu0 0
        %1363 = vmatpush1.bf16.msra.mxu0 0
        %1364 = vmatprep.subr.bf16.mxu0 0
        %1365 = vmatpush1.bf16.msra.mxu0 0
        %1366 = vmatprep.subr.bf16.mxu0 0
        %1367 = vmatpush1.bf16.msra.mxu0 0
        %1368 = vmatprep.subr.bf16.mxu0 0
        %1369 = vmatpush1.bf16.msra.mxu0 0
        %1370 = vmatprep.subr.bf16.mxu0 0
        %1371 = vmatpush1.bf16.msra.mxu0 0
        %1372 = vmatprep.subr.bf16.mxu0 0
        %1373 = vmatpush1.bf16.msra.mxu0 0
        %1374 = vmatprep.subr.bf16.mxu0 0
        %1375 = vmatpush1.bf16.msra.mxu0 0
        %1376 = vmatprep.subr.bf16.mxu0 0
        %1377 = vmatpush1.bf16.msra.mxu0 0
        %1378 = vmatprep.subr.bf16.mxu0 0
        %1379 = vmatpush1.bf16.msra.mxu0 0
        %1380 = vmatprep.subr.bf16.mxu0 0
        %1381 = vmatpush1.bf16.msra.mxu0 0
        %1382 = vmatprep.subr.bf16.mxu0 0
        %1383 = vmatpush1.bf16.msra.mxu0 0
        %1384 = vmatprep.subr.bf16.mxu0 0
        %1385 = vmatpush1.bf16.msra.mxu0 0
        %1386 = vmatprep.subr.bf16.mxu0 0
        %1387 = vmatpush1.bf16.msra.mxu0 0
        %1388 = vmatprep.mubr.bf16.mxu0 0
        %1389 = vmatmul.mubr.bf16.gmra.mrb[0].mxu0 %v1354
        %v1390 = vpop.f32.mrb[0].mxu0
        %v1391 = vadd.f32 %v1339, %v1390
        %v1392 = vpop.f32.mrb[0].mxu0
        %v1393 = vpop.f32.mrb[0].mxu0
        %v1394 = vadd.f32 %v1339, %v1393
        %v1395 = vpop.f32.mrb[0].mxu0
        %1396 = vdwg.mxu0
        %v1397 = vmul.f32 %v1391, 0.5
        %v1398 = vmul.f32 %v1394, 0.5
        %v1399 = vmul.f32 %v1391, 0.70710677
        %v1400 = vmul.f32 %v1394, 0.70710677
        %v1401 = verf.f32.pop %v1399
        %v1402 = verf.f32.pop %v1400
        %v1403 = vadd.f32 %v1401, 1.0
        %v1404 = vadd.f32 %v1402, 1.0
        %v1405 = vmul.f32 %v1397, %v1403
        %v1406 = vmul.f32 %v1398, %v1404
        %v1407 = vpack.c.bf16 %v1406, %v1405
        %v1408 = vld [vmem:[%s518] sm:$0xf]
        %v1409 = vld [vmem:[%s518 + $0x4] sm:$0xf]
        %v1410 = vld [vmem:[%s518 + $0x8] sm:$0xf]
        %v1411 = vld [vmem:[%s518 + $0xc] sm:$0xf]
        %v1412 = vld [vmem:[%s518 + $0x10] sm:$0xf]
        %v1413 = vld [vmem:[%s518 + $0x14] sm:$0xf]
        %v1414 = vld [vmem:[%s518 + $0x18] sm:$0xf]
        %v1415 = vld [vmem:[%s518 + $0x1c] sm:$0xf]
        %v1416 = vld [vmem:[%s518 + $0x20] sm:$0xf]
        %v1417 = vld [vmem:[%s518 + $0x24] sm:$0xf]
        %v1418 = vld [vmem:[%s518 + $0x28] sm:$0xf]
        %v1419 = vld [vmem:[%s518 + $0x2c] sm:$0xf]
        %v1420 = vld [vmem:[%s518 + $0x30] sm:$0xf]
        %v1421 = vld [vmem:[%s518 + $0x34] sm:$0xf]
        %v1422 = vld [vmem:[%s518 + $0x38] sm:$0xf]
        %v1423 = vld [vmem:[%s518 + $0x3c] sm:$0xf]
        %v1424 = vlaneseq
        %v1425 = vshrl.u32 %v1424, 7
        %v1426 = vsub.s32 6, %v1425
        %v1427 = vrot.slane %v573, %v1426
        %v1444 = vunpack.c.l.b16 %v1408
        %v1445 = vunpack.c.l.b16 %v1409
        %v1446 = vunpack.c.l.b16 %v1410
        %v1447 = vunpack.c.l.b16 %v1411
        %v1448 = vunpack.c.l.b16 %v1412
        %v1449 = vunpack.c.l.b16 %v1413
        %v1450 = vunpack.c.l.b16 %v1414
        %v1451 = vunpack.c.l.b16 %v1415
        %v1452 = vunpack.c.l.b16 %v1416
        %v1453 = vunpack.c.l.b16 %v1417
        %v1454 = vunpack.c.l.b16 %v1418
        %v1455 = vunpack.c.l.b16 %v1419
        %v1456 = vunpack.c.l.b16 %v1420
        %v1457 = vunpack.c.l.b16 %v1421
        %v1458 = vunpack.c.l.b16 %v1422
        %v1459 = vunpack.c.l.b16 %v1423
        %v1460 = vpack.c.b16 %v1445, %v1444
        %v1461 = vpack.c.b16 %v1447, %v1446
        %v1462 = vpack.c.b16 %v1449, %v1448
        %v1463 = vpack.c.b16 %v1451, %v1450
        %v1464 = vpack.c.b16 %v1453, %v1452
        %v1465 = vpack.c.b16 %v1455, %v1454
        %v1466 = vpack.c.b16 %v1457, %v1456
        %v1467 = vpack.c.b16 %v1459, %v1458
        %1476 = vmatprep.subr.bf16.mxu0 0
        %1477 = vmatpush1.bf16.msra.mxu0 %v1460
        %1478 = vmatprep.subr.bf16.mxu0 0
        %1479 = vmatpush1.bf16.msra.mxu0 %v1461
        %1480 = vmatprep.subr.bf16.mxu0 0
        %1481 = vmatpush1.bf16.msra.mxu0 %v1462
        %1482 = vmatprep.subr.bf16.mxu0 0
        %1483 = vmatpush1.bf16.msra.mxu0 %v1463
        %1484 = vmatprep.subr.bf16.mxu0 0
        %1485 = vmatpush1.bf16.msra.mxu0 %v1464
        %1486 = vmatprep.subr.bf16.mxu0 0
        %1487 = vmatpush1.bf16.msra.mxu0 %v1465
        %1488 = vmatprep.subr.bf16.mxu0 0
        %1489 = vmatpush1.bf16.msra.mxu0 %v1466
        %1490 = vmatprep.subr.bf16.mxu0 0
        %1491 = vmatpush1.bf16.msra.mxu0 %v1467
        %1492 = vmatprep.subr.bf16.mxu0 0
        %1493 = vmatpush1.bf16.msra.mxu0 0
        %1494 = vmatprep.subr.bf16.mxu0 0
        %1495 = vmatpush1.bf16.msra.mxu0 0
        %1496 = vmatprep.subr.bf16.mxu0 0
        %1497 = vmatpush1.bf16.msra.mxu0 0
        %1498 = vmatprep.subr.bf16.mxu0 0
        %1499 = vmatpush1.bf16.msra.mxu0 0
        %1500 = vmatprep.subr.bf16.mxu0 0
        %1501 = vmatpush1.bf16.msra.mxu0 0
        %1502 = vmatprep.subr.bf16.mxu0 0
        %1503 = vmatpush1.bf16.msra.mxu0 0
        %1504 = vmatprep.subr.bf16.mxu0 0
        %1505 = vmatpush1.bf16.msra.mxu0 0
        %1506 = vmatprep.subr.bf16.mxu0 0
        %1507 = vmatpush1.bf16.msra.mxu0 0
        %1508 = vmatprep.mubr.bf16.mxu0 0
        %1509 = vmatmul.mubr.bf16.gmra.mrb[0].mxu0 %v1407
        %v1510 = vpop.f32.mrb[0].mxu0
        %v1511 = vadd.f32 %v1427, %v1510
        %v1512 = vpop.f32.mrb[0].mxu0
        %v1513 = vpop.f32.mrb[0].mxu0
        %v1514 = vadd.f32 %v1427, %v1513
        %v1515 = vpop.f32.mrb[0].mxu0
        %1516 = vdwg.mxu0
        %v1517 = vadd.f32 %v1327, %v1511
        %v1518 = vadd.f32 %v1328, %v1514
        %v1519 = vsel %vm596, %v1517, 0.0
        %1520 = vadd.xlane.f32.xlu0 %v1519
        %v1521 = vpop.xlane.xlu0 %1520
        %v1522 = vsel %vm596, %v1518, 0.0
        %1523 = vadd.xlane.f32.xlu0 %v1522
        %v1524 = vpop.xlane.xlu0 %1523
        %v1525 = vmul.f32 %v1521, %v1296
        %v1526 = vmul.f32 %v1524, %v1296
        %v1527 = vsub.f32 %v1517, %v1525
        %v1528 = vsub.f32 %v1518, %v1526
        %v1529 = vmul.f32 %v1527, %v1527
        %v1530 = vmul.f32 %v1528, %v1528
        %v1531 = vsel %vm596, %v1529, 0.0
        %1532 = vadd.xlane.f32.xlu0 %v1531
        %v1533 = vpop.xlane.xlu0 %1532
        %v1534 = vsel %vm596, %v1530, 0.0
        %1535 = vadd.xlane.f32.xlu0 %v1534
        %v1536 = vpop.xlane.xlu0 %1535
        %v1537 = vmul.f32 %v1533, %v1296
        %v1538 = vmul.f32 %v1536, %v1296
        %v1539 = vadd.f32 %v1537, 1e-12
        %v1540 = vadd.f32 %v1538, 1e-12
        %v1541 = vrsqrt.pop %v1539
        %v1542 = vrsqrt.pop %v1540
        %v1543 = vmul.f32 %v1527, %v1541
        %v1544 = vmul.f32 %v1528, %v1542
        %v1545 = vlaneseq
        %v1546 = vshrl.u32 %v1545, 7
        %v1547 = vsub.s32 7, %v1546
        %v1548 = vrot.slane %v573, %v1547
        %v1549 = vmul.f32 %v1543, %v1548
        %v1550 = vmul.f32 %v1544, %v1548
        %v1551 = vlaneseq
        %v1552 = vshrl.u32 %v1551, 7
        %v1553 = vsub.s32 0, %v1552
        %v1554 = vrot.slane %v574, %v1553
        %v1555 = vadd.f32 %v1549, %v1554
        %v1556 = vadd.f32 %v1550, %v1554
        %1557 = vst.msk [vmem:[#allocation2] sm:$0xff] %vm596, %v1555
        %1558 = vst.msk [vmem:[#allocation2 + $0x8] sm:$0xff] %vm596, %v1556
        %p1559 = scmp.eq.s32.totalorder %s27, 1
        // Predicated region
        $region65: #{tpu_custom_call.1} parent=59 // pred_check
          %p1560 = pneg %p1559
        $region66: #{tpu_custom_call.1} parent=59 // pred_check_branch
          %1562 = sbr.rel (%p1560) target = $region68
        $region67: #{tpu_custom_call.1} parent=59 // pred_region
          %vm1563 = vcmask 253952
          %1564 = vst.msk [vmem:[#allocation4] sm:$0x1] %vm1563, %v1555
          %1565 = vst.msk [vmem:[#allocation4 + $0x1] sm:$0x1] %vm1563, %v1556
        $region68: #{tpu_custom_call.1} parent=59 // pred_fallthru
          _
        // Predicated region
        $region69: #{tpu_custom_call.1} parent=59 // pred_check
          %p1566 = pneg %p307
        $region70: #{tpu_custom_call.1} parent=59 // pred_check_branch
          %1568 = sbr.rel (%p1566) target = $region72
        $region71: #{tpu_custom_call.1} parent=59 // pred_region
          %s1569 = smul.u32 2, %s26
          %s1571 = ssub.s32 32, 32
          %1572 = vsyncadd [#allocation5], %s1571
          %s1573 = smul.addr %s1569, 16
          %s1574 = scalar_lea.hbm %s10, %s1573
          %s1575 = sshll.u32 [#allocation4], 4
          %s1576 = int_to_ptr.vmem [resolvable:$true] %s1575
          %1581 = dma.vmem_to_hbm [thread:$0]  %s1576, 32, %s1574, [#allocation5], 16, 16, 1
        $region72: #{tpu_custom_call.1} parent=59 // pred_fallthru
          _
        // Predicated region
        $region73: #{tpu_custom_call.1} parent=59 // pred_check
          %p1582 = pneg %p307
        $region74: #{tpu_custom_call.1} parent=59 // pred_check_branch
          %1584 = sbr.rel (%p1582) target = $region76
        $region75: #{tpu_custom_call.1} parent=59 // pred_region
          %1585 = dma.done [#allocation5], 32
        $region76: #{tpu_custom_call.1} parent=59 // pred_fallthru
          _
      $region60: #{tpu_custom_call.1} parent=5 // pred_fallthru
        _
      %p1586 = scmp.le.s32.totalorder 2, %s17
      // Predicated region
      $region77: #{tpu_custom_call.1} parent=5 // pred_check
        %p1587 = pneg %p1586
      $region78: #{tpu_custom_call.1} parent=5 // pred_check_branch
        %1589 = sbr.rel (%p1587) target = $region80
      $region79: #{tpu_custom_call.1} parent=5 // pred_region
        %s1590 = ssub.s32 %s17, 2
      $region80: #{tpu_custom_call.1} parent=5 // pred_fallthru
        _
    $region6: #{tpu_custom_call.1} parent=1 // loop_footer
      %s21 = sadd.s32 1, %s17
    $region7: #{tpu_custom_call.1} parent=1 // loop_footer_branch
      %16 = sbr.rel target = $region3
    $region8: #{tpu_custom_call.1} parent=1 // loop_exit
      _
    %1591 = vsyncpa [#allocation5], 1
    %s1592 = scalar_lea.sflag [#allocation5], 1
    %1593 = vsyncpa %s1592, 1

</llo_original>
